<compile_context>
chip_gen: v6e
topology: v6e:2x2x1
jax: 0.10.0
libtpu: 0.0.40
codegen_flags: <defaults>
</compile_context>

<pallas_src>
import functools

import numpy as np
import jax
import jax.numpy as jnp
from jax import lax
from jax.experimental import pallas as pl
from jax.experimental.pallas import tpu as pltpu


# ----------------------------------------------------------------------------
# Deterministic parameter setup (re-implementation of cv2.getGaussianKernel).
# ----------------------------------------------------------------------------
def gaussian_kernel_1d(radius: int = 50, sigma: float = 0.0) -> np.ndarray:
    """Matches cv2.getGaussianKernel(radius, sigma) for ksize > 7 (USMSharp default)."""
    if radius % 2 == 0:
        radius += 1
    k = radius
    if sigma <= 0:
        sigma = 0.3 * ((k - 1) * 0.5 - 1) + 0.8
    x = np.arange(k, dtype=np.float64) - (k - 1) * 0.5
    g = np.exp(-(x * x) / (2.0 * sigma * sigma))
    g /= g.sum()
    return g  # (k,) float64


def reflect_conv_matrix(g1d: np.ndarray, n: int) -> np.ndarray:
    """(n, n) matrix A such that (A @ x) along an axis of length n equals the 1-D
    cross-correlation of x with g1d under PyTorch 'reflect' padding (no edge repeat).
    Requires n > len(g1d)//2 (same constraint as F.pad(..., mode='reflect'))."""
    k = g1d.shape[0]
    p = k // 2
    if n <= p:
        raise ValueError(f"reflect padding needs spatial size > {p}, got {n}")
    a = np.zeros((n, n), dtype=np.float64)
    for i in range(n):
        for d in range(-p, p + 1):
            j = i + d
            if j < 0:
                j = -j          # reflect (no edge repeat): -1 -> 1
            elif j >= n:
                j = 2 * (n - 1) - j
            a[i, j] += g1d[d + p]
    return a


def _padded_conv_matrix(g1d: np.ndarray, n: int, n_pad: int, transpose: bool) -> np.ndarray:
    """Zero-embed the (n, n) reflect-conv matrix (optionally transposed) into
    (n_pad, n_pad) so zero-padded rows/cols of the image stay exactly zero."""
    a = reflect_conv_matrix(g1d, n)
    if transpose:
        a = a.T
    out = np.zeros((n_pad, n_pad), dtype=np.float64)
    out[:n, :n] = a
    return out


def _round_up(x: int, m: int) -> int:
    return -(-x // m) * m


def _choose_group(n: int, h: int, w: int) -> int:
    """Number of images stacked per grid step.  Targets G*H >= 256 (fills the
    256-row MXU on v6e/v7x; automatically >= 128 for v5e), keeps >= 2 grid steps
    when possible (so a core-parallel axis has work for both v7x TensorCores),
    and keeps the per-step working set comfortably inside VMEM."""
    divisors = [d for d in range(1, n + 1) if n % d == 0]
    budget = 20 * 1024 * 1024  # ~10 live f32 (G,H,W)-sized buffers per step
    fits = [d for d in divisors if 10 * d * h * w * 4 <= budget]
    if not fits:
        return 1
    for d in fits:
        if d * h >= 256 and (n // d >= 2 or d == n):
            return d
    return fits[-1]


# ----------------------------------------------------------------------------
# Fused Pallas kernel: blur -> residual -> mask -> soft_mask -> clip + blend.
# ----------------------------------------------------------------------------
def _usm_kernel(img_ref, ah_ref, awt_ref, out_ref, *, weight, thr):
    # img_ref: (G, H, W) f32 stacked images
    # ah_ref : (H, H) bf16  height-conv matrix (left multiply)
    # awt_ref: (W, W) bf16  width-conv matrix  (right multiply, already transposed)
    g, h, w = img_ref.shape
    x = img_ref[...]                      # (G, H, W) f32
    ah = ah_ref[...]
    awt = awt_ref[...]

    def width_conv(v_bf16):
        # One big MXU matmul: (G*H, W) @ (W, W), f32 accumulation, bf16 out for
        # the second (height) matmul.
        t = jnp.dot(v_bf16.reshape(g * h, w), awt,
                    preferred_element_type=jnp.float32)
        return t.astype(jnp.bfloat16).reshape(g, h, w)

    # ---- blur #1 + residual + binary mask --------------------------------
    t1 = width_conv(x.astype(jnp.bfloat16))
    residuals = []
    masks = []
    for i in range(g):                    # G independent (H,H)@(H,W) MXU matmuls
        blur_i = jnp.dot(ah, t1[i], preferred_element_type=jnp.float32)
        r = x[i] - blur_i
        residuals.append(r)
        masks.append((jnp.abs(r) > thr).astype(jnp.bfloat16))  # exact 0/1 in bf16

    # ---- blur #2 (soft mask) + clip + blend ------------------------------
    t2 = width_conv(jnp.stack(masks, axis=0))
    for i in range(g):
        soft_i = jnp.dot(ah, t2[i], preferred_element_type=jnp.float32)
        sharp_i = jnp.clip(x[i] + weight * residuals[i], 0.0, 1.0)
        out_ref[i] = soft_i * sharp_i + (1.0 - soft_i) * x[i]


# ----------------------------------------------------------------------------
# Wrapper
# ----------------------------------------------------------------------------
def usm_sharp(img, g1d, weight=0.5, threshold=10, core_parallel=False):
    b, c, h, w = img.shape
    n = b * c

    # Pad W to a lane-dense multiple of 128 (unmasked vst stores) and H to a
    # multiple of 16 (bf16 sublane tile -> the (G*H, W) reshape is free).
    hp = _round_up(h, 16)
    wp = _round_up(w, 128)

    imgs = img.reshape(n, h, w).astype(jnp.float32)
    if (hp, wp) != (h, w):
        imgs = jnp.pad(imgs, ((0, 0), (0, hp - h), (0, wp - w)))

    g = np.asarray(g1d, dtype=np.float64)
    ah = jnp.asarray(_padded_conv_matrix(g, h, hp, transpose=False), dtype=jnp.bfloat16)
    awt = jnp.asarray(_padded_conv_matrix(g, w, wp, transpose=True), dtype=jnp.bfloat16)

    grp = _choose_group(n, hp, wp)
    grid = (n // grp,)

    # Conv matrices are constant across grid steps; single-buffer them only when
    # double-buffering would cost meaningful VMEM (SR-scale H/W).
    conv_bytes = (hp * hp + wp * wp) * 2
    mat_kwargs = dict(pipeline_mode=pl.Buffered(1)) if conv_bytes > (2 << 20) else {}

    # Explicit VMEM cap: in/out double-buffered blocks + conv matrices + temporaries.
    img_block_bytes = grp * hp * wp * 4
    est = 4 * img_block_bytes + 8 * img_block_bytes + 2 * conv_bytes
    vmem_limit = int(min(96 << 20, max(32 << 20, 1.5 * est)))

    dim_sem = (pltpu.CORE_PARALLEL,) if core_parallel else ("parallel",)

    cost = pl.CostEstimate(
        flops=4 * n * hp * wp * (hp + wp),        # two separable blurs, two matmuls each
        transcendentals=0,
        bytes_accessed=2 * n * hp * wp * 4 + 2 * conv_bytes,
    )

    kernel = functools.partial(_usm_kernel,
                               weight=float(weight),
                               thr=float(threshold) / 255.0)
    out = pl.pallas_call(
        kernel,
        grid=grid,
        in_specs=[
            pl.BlockSpec((grp, hp, wp), lambda i: (i, 0, 0)),
            pl.BlockSpec((hp, hp), lambda i: (0, 0), **mat_kwargs),
            pl.BlockSpec((wp, wp), lambda i: (0, 0), **mat_kwargs),
        ],
        out_specs=pl.BlockSpec((grp, hp, wp), lambda i: (i, 0, 0)),
        out_shape=jax.ShapeDtypeStruct((n, hp, wp), jnp.float32),
        compiler_params=pltpu.CompilerParams(
            dimension_semantics=dim_sem,
            vmem_limit_bytes=vmem_limit),
        cost_estimate=cost,
    )(imgs, ah, awt)

    out = out[:, :h, :w]
    return out.reshape(b, c, h, w)


# ----------------------------------------------------------------------------
# Pure-JAX f32 reference (mirrors the PyTorch forward) for a sanity check.
# ----------------------------------------------------------------------------
def usm_sharp_ref(img, g1d, weight=0.5, threshold=10):
    b, c, h, w = img.shape
    g = np.asarray(g1d, dtype=np.float64)
    kern2d = jnp.asarray(np.outer(g, g), dtype=jnp.float32)
    k = kern2d.shape[0]
    p = k // 2
    kk = kern2d.reshape(1, 1, k, k)

    def filt(x):
        xp = jnp.pad(x, ((0, 0), (0, 0), (p, p), (p, p)), mode="reflect")
        xp = xp.reshape(b * c, 1, h + 2 * p, w + 2 * p)
        y = lax.conv_general_dilated(
            xp, kk, (1, 1), "VALID",
            dimension_numbers=("NCHW", "OIHW", "NCHW"),
            precision=lax.Precision.HIGHEST)
        return y.reshape(b, c, h, w)

    blur = filt(img)
    residual = img - blur
    mask = (jnp.abs(residual) * 255.0 > threshold).astype(jnp.float32)
    soft_mask = filt(mask)
    sharp = jnp.clip(img + weight * residual, 0.0, 1.0)
    return soft_mask * sharp + (1 - soft_mask) * img


if __name__ == "__main__":
    # Module defaults: radius=50 -> 51x51 Gaussian, sigma via cv2's default formula.
    g1d = gaussian_kernel_1d(radius=50, sigma=0)

    key = jax.random.PRNGKey(0)
    # Spatial dims must exceed radius // 2 = 25 (PyTorch reflect-pad constraint).
    # B*C = 8 -> 4 images stacked per grid step (G*H = 256 rows fills the MXU),
    # grid length 2 keeps a core-parallel axis meaningful; W = 128 is lane-dense.
    img = jax.random.uniform(key, (2, 4, 64, 128), dtype=jnp.float32)

    out = usm_sharp(img, g1d, weight=0.5, threshold=10)
    out = jax.block_until_ready(out)

    ref = usm_sharp_ref(img, g1d, weight=0.5, threshold=10)
    assert out.shape == img.shape and out.dtype == jnp.float32
    np.testing.assert_allclose(np.asarray(out), np.asarray(ref), atol=5e-2)

    print("KERNEL_OK")
</pallas_src>

<mosaic_0001>
module attributes {stable_mosaic.version = 11 : i64} {
  func.func @_usm_kernel(%arg0: i32, %arg1: memref<4x64x128xf32, #tpu.memory_space<vmem>>, %arg2: memref<64x64xbf16, #tpu.memory_space<vmem>>, %arg3: memref<128x128xbf16, #tpu.memory_space<vmem>>, %arg4: memref<4x64x128xf32, #tpu.memory_space<vmem>>) attributes {dimension_semantics = [#tpu.dimension_semantics<parallel>], iteration_bounds = array<i64: 2>, scalar_prefetch = 0 : i64, scratch_operands = 0 : i64, tpu.core_type = #tpu.core_type<tc>, window_params = [{transform_indices = @transform_0, window_bounds = array<i64: 4, 64, 128>}, {pipeline_mode = #tpu.pipeline_mode<synchronous>, transform_indices = @transform_1, window_bounds = array<i64: 64, 64>}, {pipeline_mode = #tpu.pipeline_mode<synchronous>, transform_indices = @transform_2, window_bounds = array<i64: 128, 128>}, {transform_indices = @transform_3, window_bounds = array<i64: 4, 64, 128>}]} {
    %c0 = arith.constant 0 : index
    %c0_0 = arith.constant 0 : index
    %c0_1 = arith.constant 0 : index
    %0 = vector.load %arg1[%c0, %c0_0, %c0_1] : memref<4x64x128xf32, #tpu.memory_space<vmem>>, vector<4x64x128xf32>
    %c0_2 = arith.constant 0 : index
    %c0_3 = arith.constant 0 : index
    %1 = vector.load %arg2[%c0_2, %c0_3] : memref<64x64xbf16, #tpu.memory_space<vmem>>, vector<64x64xbf16>
    %c0_4 = arith.constant 0 : index
    %c0_5 = arith.constant 0 : index
    %2 = vector.load %arg3[%c0_4, %c0_5] : memref<128x128xbf16, #tpu.memory_space<vmem>>, vector<128x128xbf16>
    %3 = arith.truncf %0 : vector<4x64x128xf32> to vector<4x64x128xbf16>
    %4 = vector.shape_cast %3 : vector<4x64x128xbf16> to vector<256x128xbf16>
    %cst = arith.constant dense<0.000000e+00> : vector<256x128xf32>
    %5 = tpu.matmul %4, %2, %cst {dimension_numbers = #tpu.dot_dimension_numbers<[1], [0], [0], [1], [0, 0, 1, 1], [], []>} : vector<256x128xbf16>, vector<128x128xbf16>, vector<256x128xf32> -> vector<256x128xf32>
    %6 = arith.truncf %5 : vector<256x128xf32> to vector<256x128xbf16>
    %7 = vector.shape_cast %6 : vector<256x128xbf16> to vector<4x64x128xbf16>
    %8 = vector.extract_strided_slice %7 {offsets = [0, 0, 0], sizes = [1, 64, 128], strides = [1, 1, 1]} : vector<4x64x128xbf16> to vector<1x64x128xbf16>
    %9 = vector.shape_cast %8 : vector<1x64x128xbf16> to vector<64x128xbf16>
    %cst_6 = arith.constant dense<0.000000e+00> : vector<64x128xf32>
    %10 = tpu.matmul %1, %9, %cst_6 {dimension_numbers = #tpu.dot_dimension_numbers<[1], [0], [0], [1], [0, 0, 1, 1], [], []>} : vector<64x64xbf16>, vector<64x128xbf16>, vector<64x128xf32> -> vector<64x128xf32>
    %11 = vector.extract_strided_slice %0 {offsets = [0, 0, 0], sizes = [1, 64, 128], strides = [1, 1, 1]} : vector<4x64x128xf32> to vector<1x64x128xf32>
    %12 = vector.shape_cast %11 : vector<1x64x128xf32> to vector<64x128xf32>
    %13 = arith.subf %12, %10 : vector<64x128xf32>
    %14 = math.absf %13 : vector<64x128xf32>
    %cst_7 = arith.constant 0.0392156877 : f32
    %15 = vector.broadcast %cst_7 : f32 to vector<64x128xf32>
    %16 = arith.cmpf ogt, %14, %15 : vector<64x128xf32>
    %17 = arith.extui %16 : vector<64x128xi1> to vector<64x128xi32>
    %18 = arith.sitofp %17 : vector<64x128xi32> to vector<64x128xf32>
    %19 = arith.truncf %18 : vector<64x128xf32> to vector<64x128xbf16>
    %20 = vector.extract_strided_slice %7 {offsets = [1, 0, 0], sizes = [1, 64, 128], strides = [1, 1, 1]} : vector<4x64x128xbf16> to vector<1x64x128xbf16>
    %21 = vector.shape_cast %20 : vector<1x64x128xbf16> to vector<64x128xbf16>
    %cst_8 = arith.constant dense<0.000000e+00> : vector<64x128xf32>
    %22 = tpu.matmul %1, %21, %cst_8 {dimension_numbers = #tpu.dot_dimension_numbers<[1], [0], [0], [1], [0, 0, 1, 1], [], []>} : vector<64x64xbf16>, vector<64x128xbf16>, vector<64x128xf32> -> vector<64x128xf32>
    %23 = vector.extract_strided_slice %0 {offsets = [1, 0, 0], sizes = [1, 64, 128], strides = [1, 1, 1]} : vector<4x64x128xf32> to vector<1x64x128xf32>
    %24 = vector.shape_cast %23 : vector<1x64x128xf32> to vector<64x128xf32>
    %25 = arith.subf %24, %22 : vector<64x128xf32>
    %26 = math.absf %25 : vector<64x128xf32>
    %cst_9 = arith.constant 0.0392156877 : f32
    %27 = vector.broadcast %cst_9 : f32 to vector<64x128xf32>
    %28 = arith.cmpf ogt, %26, %27 : vector<64x128xf32>
    %29 = arith.extui %28 : vector<64x128xi1> to vector<64x128xi32>
    %30 = arith.sitofp %29 : vector<64x128xi32> to vector<64x128xf32>
    %31 = arith.truncf %30 : vector<64x128xf32> to vector<64x128xbf16>
    %32 = vector.extract_strided_slice %7 {offsets = [2, 0, 0], sizes = [1, 64, 128], strides = [1, 1, 1]} : vector<4x64x128xbf16> to vector<1x64x128xbf16>
    %33 = vector.shape_cast %32 : vector<1x64x128xbf16> to vector<64x128xbf16>
    %cst_10 = arith.constant dense<0.000000e+00> : vector<64x128xf32>
    %34 = tpu.matmul %1, %33, %cst_10 {dimension_numbers = #tpu.dot_dimension_numbers<[1], [0], [0], [1], [0, 0, 1, 1], [], []>} : vector<64x64xbf16>, vector<64x128xbf16>, vector<64x128xf32> -> vector<64x128xf32>
    %35 = vector.extract_strided_slice %0 {offsets = [2, 0, 0], sizes = [1, 64, 128], strides = [1, 1, 1]} : vector<4x64x128xf32> to vector<1x64x128xf32>
    %36 = vector.shape_cast %35 : vector<1x64x128xf32> to vector<64x128xf32>
    %37 = arith.subf %36, %34 : vector<64x128xf32>
    %38 = math.absf %37 : vector<64x128xf32>
    %cst_11 = arith.constant 0.0392156877 : f32
    %39 = vector.broadcast %cst_11 : f32 to vector<64x128xf32>
    %40 = arith.cmpf ogt, %38, %39 : vector<64x128xf32>
    %41 = arith.extui %40 : vector<64x128xi1> to vector<64x128xi32>
    %42 = arith.sitofp %41 : vector<64x128xi32> to vector<64x128xf32>
    %43 = arith.truncf %42 : vector<64x128xf32> to vector<64x128xbf16>
    %44 = vector.extract_strided_slice %7 {offsets = [3, 0, 0], sizes = [1, 64, 128], strides = [1, 1, 1]} : vector<4x64x128xbf16> to vector<1x64x128xbf16>
    %45 = vector.shape_cast %44 : vector<1x64x128xbf16> to vector<64x128xbf16>
    %cst_12 = arith.constant dense<0.000000e+00> : vector<64x128xf32>
    %46 = tpu.matmul %1, %45, %cst_12 {dimension_numbers = #tpu.dot_dimension_numbers<[1], [0], [0], [1], [0, 0, 1, 1], [], []>} : vector<64x64xbf16>, vector<64x128xbf16>, vector<64x128xf32> -> vector<64x128xf32>
    %47 = vector.extract_strided_slice %0 {offsets = [3, 0, 0], sizes = [1, 64, 128], strides = [1, 1, 1]} : vector<4x64x128xf32> to vector<1x64x128xf32>
    %48 = vector.shape_cast %47 : vector<1x64x128xf32> to vector<64x128xf32>
    %49 = arith.subf %48, %46 : vector<64x128xf32>
    %50 = math.absf %49 : vector<64x128xf32>
    %cst_13 = arith.constant 0.0392156877 : f32
    %51 = vector.broadcast %cst_13 : f32 to vector<64x128xf32>
    %52 = arith.cmpf ogt, %50, %51 : vector<64x128xf32>
    %53 = arith.extui %52 : vector<64x128xi1> to vector<64x128xi32>
    %54 = arith.sitofp %53 : vector<64x128xi32> to vector<64x128xf32>
    %55 = arith.truncf %54 : vector<64x128xf32> to vector<64x128xbf16>
    %56 = vector.shape_cast %19 : vector<64x128xbf16> to vector<1x64x128xbf16>
    %57 = vector.shape_cast %31 : vector<64x128xbf16> to vector<1x64x128xbf16>
    %58 = vector.shape_cast %43 : vector<64x128xbf16> to vector<1x64x128xbf16>
    %59 = vector.shape_cast %55 : vector<64x128xbf16> to vector<1x64x128xbf16>
    %60 = tpu.concatenate %56, %57, %58, %59 in 0 : vector<1x64x128xbf16>, vector<1x64x128xbf16>, vector<1x64x128xbf16>, vector<1x64x128xbf16> -> vector<4x64x128xbf16>
    %61 = vector.shape_cast %60 : vector<4x64x128xbf16> to vector<256x128xbf16>
    %cst_14 = arith.constant dense<0.000000e+00> : vector<256x128xf32>
    %62 = tpu.matmul %61, %2, %cst_14 {dimension_numbers = #tpu.dot_dimension_numbers<[1], [0], [0], [1], [0, 0, 1, 1], [], []>} : vector<256x128xbf16>, vector<128x128xbf16>, vector<256x128xf32> -> vector<256x128xf32>
    %63 = arith.truncf %62 : vector<256x128xf32> to vector<256x128xbf16>
    %64 = vector.shape_cast %63 : vector<256x128xbf16> to vector<4x64x128xbf16>
    %65 = vector.extract_strided_slice %64 {offsets = [0, 0, 0], sizes = [1, 64, 128], strides = [1, 1, 1]} : vector<4x64x128xbf16> to vector<1x64x128xbf16>
    %66 = vector.shape_cast %65 : vector<1x64x128xbf16> to vector<64x128xbf16>
    %cst_15 = arith.constant dense<0.000000e+00> : vector<64x128xf32>
    %67 = tpu.matmul %1, %66, %cst_15 {dimension_numbers = #tpu.dot_dimension_numbers<[1], [0], [0], [1], [0, 0, 1, 1], [], []>} : vector<64x64xbf16>, vector<64x128xbf16>, vector<64x128xf32> -> vector<64x128xf32>
    %68 = vector.extract_strided_slice %0 {offsets = [0, 0, 0], sizes = [1, 64, 128], strides = [1, 1, 1]} : vector<4x64x128xf32> to vector<1x64x128xf32>
    %69 = vector.shape_cast %68 : vector<1x64x128xf32> to vector<64x128xf32>
    %cst_16 = arith.constant 5.000000e-01 : f32
    %70 = vector.broadcast %cst_16 : f32 to vector<64x128xf32>
    %71 = arith.mulf %70, %13 : vector<64x128xf32>
    %72 = arith.addf %69, %71 : vector<64x128xf32>
    %cst_17 = arith.constant 0.000000e+00 : f32
    %cst_18 = arith.constant 1.000000e+00 : f32
    %73 = vector.broadcast %cst_17 : f32 to vector<64x128xf32>
    %74 = arith.maximumf %73, %72 : vector<64x128xf32>
    %75 = vector.broadcast %cst_18 : f32 to vector<64x128xf32>
    %76 = arith.minimumf %75, %74 : vector<64x128xf32>
    %77 = arith.mulf %67, %76 : vector<64x128xf32>
    %cst_19 = arith.constant 1.000000e+00 : f32
    %78 = vector.broadcast %cst_19 : f32 to vector<64x128xf32>
    %79 = arith.subf %78, %67 : vector<64x128xf32>
    %80 = vector.extract_strided_slice %0 {offsets = [0, 0, 0], sizes = [1, 64, 128], strides = [1, 1, 1]} : vector<4x64x128xf32> to vector<1x64x128xf32>
    %81 = vector.shape_cast %80 : vector<1x64x128xf32> to vector<64x128xf32>
    %82 = arith.mulf %79, %81 : vector<64x128xf32>
    %83 = arith.addf %77, %82 : vector<64x128xf32>
    %c0_20 = arith.constant 0 : index
    %c0_21 = arith.constant 0 : index
    %c0_22 = arith.constant 0 : index
    %84 = vector.load %arg4[%c0_20, %c0_21, %c0_22] : memref<4x64x128xf32, #tpu.memory_space<vmem>>, vector<1x64x128xf32>
    %85 = vector.shape_cast %84 : vector<1x64x128xf32> to vector<64x128xf32>
    %86 = vector.shape_cast %83 : vector<64x128xf32> to vector<1x64x128xf32>
    tpu.vector_store %arg4[%c0_20, %c0_21, %c0_22], %86 {strides = array<i32>} : memref<4x64x128xf32, #tpu.memory_space<vmem>>, vector<1x64x128xf32>,
    %87 = vector.extract_strided_slice %64 {offsets = [1, 0, 0], sizes = [1, 64, 128], strides = [1, 1, 1]} : vector<4x64x128xbf16> to vector<1x64x128xbf16>
    %88 = vector.shape_cast %87 : vector<1x64x128xbf16> to vector<64x128xbf16>
    %cst_23 = arith.constant dense<0.000000e+00> : vector<64x128xf32>
    %89 = tpu.matmul %1, %88, %cst_23 {dimension_numbers = #tpu.dot_dimension_numbers<[1], [0], [0], [1], [0, 0, 1, 1], [], []>} : vector<64x64xbf16>, vector<64x128xbf16>, vector<64x128xf32> -> vector<64x128xf32>
    %90 = vector.extract_strided_slice %0 {offsets = [1, 0, 0], sizes = [1, 64, 128], strides = [1, 1, 1]} : vector<4x64x128xf32> to vector<1x64x128xf32>
    %91 = vector.shape_cast %90 : vector<1x64x128xf32> to vector<64x128xf32>
    %cst_24 = arith.constant 5.000000e-01 : f32
    %92 = vector.broadcast %cst_24 : f32 to vector<64x128xf32>
    %93 = arith.mulf %92, %25 : vector<64x128xf32>
    %94 = arith.addf %91, %93 : vector<64x128xf32>
    %cst_25 = arith.constant 0.000000e+00 : f32
    %cst_26 = arith.constant 1.000000e+00 : f32
    %95 = vector.broadcast %cst_25 : f32 to vector<64x128xf32>
    %96 = arith.maximumf %95, %94 : vector<64x128xf32>
    %97 = vector.broadcast %cst_26 : f32 to vector<64x128xf32>
    %98 = arith.minimumf %97, %96 : vector<64x128xf32>
    %99 = arith.mulf %89, %98 : vector<64x128xf32>
    %cst_27 = arith.constant 1.000000e+00 : f32
    %100 = vector.broadcast %cst_27 : f32 to vector<64x128xf32>
    %101 = arith.subf %100, %89 : vector<64x128xf32>
    %102 = vector.extract_strided_slice %0 {offsets = [1, 0, 0], sizes = [1, 64, 128], strides = [1, 1, 1]} : vector<4x64x128xf32> to vector<1x64x128xf32>
    %103 = vector.shape_cast %102 : vector<1x64x128xf32> to vector<64x128xf32>
    %104 = arith.mulf %101, %103 : vector<64x128xf32>
    %105 = arith.addf %99, %104 : vector<64x128xf32>
    %c1 = arith.constant 1 : index
    %c0_28 = arith.constant 0 : index
    %c0_29 = arith.constant 0 : index
    %106 = vector.load %arg4[%c1, %c0_28, %c0_29] : memref<4x64x128xf32, #tpu.memory_space<vmem>>, vector<1x64x128xf32>
    %107 = vector.shape_cast %106 : vector<1x64x128xf32> to vector<64x128xf32>
    %108 = vector.shape_cast %105 : vector<64x128xf32> to vector<1x64x128xf32>
    tpu.vector_store %arg4[%c1, %c0_28, %c0_29], %108 {strides = array<i32>} : memref<4x64x128xf32, #tpu.memory_space<vmem>>, vector<1x64x128xf32>,
    %109 = vector.extract_strided_slice %64 {offsets = [2, 0, 0], sizes = [1, 64, 128], strides = [1, 1, 1]} : vector<4x64x128xbf16> to vector<1x64x128xbf16>
    %110 = vector.shape_cast %109 : vector<1x64x128xbf16> to vector<64x128xbf16>
    %cst_30 = arith.constant dense<0.000000e+00> : vector<64x128xf32>
    %111 = tpu.matmul %1, %110, %cst_30 {dimension_numbers = #tpu.dot_dimension_numbers<[1], [0], [0], [1], [0, 0, 1, 1], [], []>} : vector<64x64xbf16>, vector<64x128xbf16>, vector<64x128xf32> -> vector<64x128xf32>
    %112 = vector.extract_strided_slice %0 {offsets = [2, 0, 0], sizes = [1, 64, 128], strides = [1, 1, 1]} : vector<4x64x128xf32> to vector<1x64x128xf32>
    %113 = vector.shape_cast %112 : vector<1x64x128xf32> to vector<64x128xf32>
    %cst_31 = arith.constant 5.000000e-01 : f32
    %114 = vector.broadcast %cst_31 : f32 to vector<64x128xf32>
    %115 = arith.mulf %114, %37 : vector<64x128xf32>
    %116 = arith.addf %113, %115 : vector<64x128xf32>
    %cst_32 = arith.constant 0.000000e+00 : f32
    %cst_33 = arith.constant 1.000000e+00 : f32
    %117 = vector.broadcast %cst_32 : f32 to vector<64x128xf32>
    %118 = arith.maximumf %117, %116 : vector<64x128xf32>
    %119 = vector.broadcast %cst_33 : f32 to vector<64x128xf32>
    %120 = arith.minimumf %119, %118 : vector<64x128xf32>
    %121 = arith.mulf %111, %120 : vector<64x128xf32>
    %cst_34 = arith.constant 1.000000e+00 : f32
    %122 = vector.broadcast %cst_34 : f32 to vector<64x128xf32>
    %123 = arith.subf %122, %111 : vector<64x128xf32>
    %124 = vector.extract_strided_slice %0 {offsets = [2, 0, 0], sizes = [1, 64, 128], strides = [1, 1, 1]} : vector<4x64x128xf32> to vector<1x64x128xf32>
    %125 = vector.shape_cast %124 : vector<1x64x128xf32> to vector<64x128xf32>
    %126 = arith.mulf %123, %125 : vector<64x128xf32>
    %127 = arith.addf %121, %126 : vector<64x128xf32>
    %c2 = arith.constant 2 : index
    %c0_35 = arith.constant 0 : index
    %c0_36 = arith.constant 0 : index
    %128 = vector.load %arg4[%c2, %c0_35, %c0_36] : memref<4x64x128xf32, #tpu.memory_space<vmem>>, vector<1x64x128xf32>
    %129 = vector.shape_cast %128 : vector<1x64x128xf32> to vector<64x128xf32>
    %130 = vector.shape_cast %127 : vector<64x128xf32> to vector<1x64x128xf32>
    tpu.vector_store %arg4[%c2, %c0_35, %c0_36], %130 {strides = array<i32>} : memref<4x64x128xf32, #tpu.memory_space<vmem>>, vector<1x64x128xf32>,
    %131 = vector.extract_strided_slice %64 {offsets = [3, 0, 0], sizes = [1, 64, 128], strides = [1, 1, 1]} : vector<4x64x128xbf16> to vector<1x64x128xbf16>
    %132 = vector.shape_cast %131 : vector<1x64x128xbf16> to vector<64x128xbf16>
    %cst_37 = arith.constant dense<0.000000e+00> : vector<64x128xf32>
    %133 = tpu.matmul %1, %132, %cst_37 {dimension_numbers = #tpu.dot_dimension_numbers<[1], [0], [0], [1], [0, 0, 1, 1], [], []>} : vector<64x64xbf16>, vector<64x128xbf16>, vector<64x128xf32> -> vector<64x128xf32>
    %134 = vector.extract_strided_slice %0 {offsets = [3, 0, 0], sizes = [1, 64, 128], strides = [1, 1, 1]} : vector<4x64x128xf32> to vector<1x64x128xf32>
    %135 = vector.shape_cast %134 : vector<1x64x128xf32> to vector<64x128xf32>
    %cst_38 = arith.constant 5.000000e-01 : f32
    %136 = vector.broadcast %cst_38 : f32 to vector<64x128xf32>
    %137 = arith.mulf %136, %49 : vector<64x128xf32>
    %138 = arith.addf %135, %137 : vector<64x128xf32>
    %cst_39 = arith.constant 0.000000e+00 : f32
    %cst_40 = arith.constant 1.000000e+00 : f32
    %139 = vector.broadcast %cst_39 : f32 to vector<64x128xf32>
    %140 = arith.maximumf %139, %138 : vector<64x128xf32>
    %141 = vector.broadcast %cst_40 : f32 to vector<64x128xf32>
    %142 = arith.minimumf %141, %140 : vector<64x128xf32>
    %143 = arith.mulf %133, %142 : vector<64x128xf32>
    %cst_41 = arith.constant 1.000000e+00 : f32
    %144 = vector.broadcast %cst_41 : f32 to vector<64x128xf32>
    %145 = arith.subf %144, %133 : vector<64x128xf32>
    %146 = vector.extract_strided_slice %0 {offsets = [3, 0, 0], sizes = [1, 64, 128], strides = [1, 1, 1]} : vector<4x64x128xf32> to vector<1x64x128xf32>
    %147 = vector.shape_cast %146 : vector<1x64x128xf32> to vector<64x128xf32>
    %148 = arith.mulf %145, %147 : vector<64x128xf32>
    %149 = arith.addf %143, %148 : vector<64x128xf32>
    %c3 = arith.constant 3 : index
    %c0_42 = arith.constant 0 : index
    %c0_43 = arith.constant 0 : index
    %150 = vector.load %arg4[%c3, %c0_42, %c0_43] : memref<4x64x128xf32, #tpu.memory_space<vmem>>, vector<1x64x128xf32>
    %151 = vector.shape_cast %150 : vector<1x64x128xf32> to vector<64x128xf32>
    %152 = vector.shape_cast %149 : vector<64x128xf32> to vector<1x64x128xf32>
    tpu.vector_store %arg4[%c3, %c0_42, %c0_43], %152 {strides = array<i32>} : memref<4x64x128xf32, #tpu.memory_space<vmem>>, vector<1x64x128xf32>,
    return
  }
  func.func @transform_0(%arg0: i32) -> (i32, i32, i32) {
    %c0_i32 = arith.constant 0 : i32
    %c0_i32_0 = arith.constant 0 : i32
    %c0_i32_1 = arith.constant 0 : i32
    return %arg0, %c0_i32, %c0_i32_0 : i32, i32, i32
  }
  func.func @transform_1(%arg0: i32) -> (i32, i32) {
    %c0_i32 = arith.constant 0 : i32
    %c0_i32_0 = arith.constant 0 : i32
    %c0_i32_1 = arith.constant 0 : i32
    return %c0_i32, %c0_i32_0 : i32, i32
  }
  func.func @transform_2(%arg0: i32) -> (i32, i32) {
    %c0_i32 = arith.constant 0 : i32
    %c0_i32_0 = arith.constant 0 : i32
    %c0_i32_1 = arith.constant 0 : i32
    return %c0_i32, %c0_i32_0 : i32, i32
  }
  func.func @transform_3(%arg0: i32) -> (i32, i32, i32) {
    %c0_i32 = arith.constant 0 : i32
    %c0_i32_0 = arith.constant 0 : i32
    %c0_i32_1 = arith.constant 0 : i32
    return %arg0, %c0_i32, %c0_i32_0 : i32, i32, i32
  }
}

</mosaic_0001>

<llo_original>
// kernel: tpu_custom_call.1
$region0: #{tpu_custom_call.1}
  #allocation0 [shape = 'u32[]', space=smem, size = 0x4, offset = 0x4, fixed_abs, tag = 'smem constant byte address 0x4 - core index']
  #allocation1 [shape = 'u32[144,128]{1,0:T(1,128)}', space=vmem, size = 0x12000, scoped, tag = 'internal scratch']
  %s0 = inlined_call_operand.hbm [shape: f32[8,64,128], index: 0, kind: input, shape index: {}]
  %s1 = inlined_call_operand.hbm [shape: bf16[64,64], index: 1, kind: input, shape index: {}]
  %s2 = inlined_call_operand.hbm [shape: bf16[128,128], index: 2, kind: input, shape index: {}]
  %s3 = inlined_call_operand.hbm [shape: f32[8,64,128], index: 3, kind: output, shape index: {}]
  %s4 = sld [smem:[#allocation0]]
  $region57: #{tpu_custom_call.1} parent=0
    _
  %s6 = ssub.s32 1, %s4
  %s7 = scalar_select 0, %s6, %s4
  $region1: #{tpu_custom_call.1} parent=0
    #allocation2 [shape = 'u8[262144]{0}', space=vmem, size = 0x40000, scoped, tag = 'input window, operand 0']
    #allocation3 [shape = 's32[2]{0}', space=sflag, size = 0x8, scoped, tag = 'scoped memory for tpu_custom_call.1']
    #allocation4 [shape = 's32[2]{0}', space=sflag, size = 0x8, scoped, tag = 'scoped memory for tpu_custom_call.1']
    #allocation5 [shape = 'u8[16384]{0}', space=vmem, size = 0x4000, scoped, tag = 'input window, operand 1, single buffered']
    #allocation6 [shape = 's32[1]{0}', space=sflag, size = 0x4, scoped, tag = 'scoped memory for tpu_custom_call.1']
    #allocation7 [shape = 'u8[32768]{0}', space=vmem, size = 0x8000, scoped, tag = 'input window, operand 2, single buffered']
    #allocation8 [shape = 'u8[262144]{0}', space=vmem, size = 0x40000, scoped, tag = 'output window, operand 0']
    %8 = vsyncpa [#allocation3], 0
    %s9 = scalar_lea.sflag [#allocation3], 1
    %10 = vsyncpa %s9, 0
    %11 = vsyncpa [#allocation6], 0
    %12 = vsyncpa [#allocation4], 0
    %s13 = scalar_lea.sflag [#allocation4], 1
    %14 = vsyncpa %s13, 0
    loop: start=0, step=1, limit=4
    $region2: #{tpu_custom_call.1} parent=1 // loop_pre_header
      _
    $region3: #{tpu_custom_call.1} parent=1 // loop_header
      %s16 = sphi 0, %s20
      %p17 = scmp.ge.s32.totalorder %s16, 4
      %s26 = sphi 0, %s28
      %s29 = sphi 0, %s26
      %s30 = sphi 0, %s29
      %s46 = sphi 0, %s30
      %s50 = sphi 0, %s50
      %s52 = sphi 0, %s50
      %s53 = sphi 0, %s52
      %s67 = sphi 0, %s53
      %s71 = sphi 0, %s71
      %s73 = sphi 0, %s71
      %s74 = sphi 0, %s73
      %s88 = sphi 0, %s74
      %s94 = sphi 0, %s96
      %s97 = sphi 0, %s94
      %s98 = sphi 0, %s97
      %s114 = sphi 0, %s98
    $region4: #{tpu_custom_call.1} parent=1 // loop_header_branch
      %19 = sbr.rel (%p17) target = $region8
    $region5: #{tpu_custom_call.1} parent=1 // loop_body
      %s21 = ssub.s32 %s16, 1
      %s22 = ssub.s32 %s16, 2
      %s23 = sadd.s32 %s16, 1
      %s24 = ssub.s32 %s16, %s23
      %p25 = scmp.eq.s32.totalorder %s24, 0
      %s27 = sadd.s32 %s26, 1
      %s28 = scalar_select %p25, %s26, %s27
      %p31 = pneg %p25
      %p32 = scmp.eq.s32.totalorder %s16, 1
      %p33 = por %p31, %p32
      %p34 = scmp.ne.s32.totalorder %s26, %s29
      %p35 = scmp.eq.s32.totalorder %s16, 0
      %p36 = por %p34, %p35
      %p37 = scmp.ne.s32.totalorder %s26, %s29
      %p38 = scmp.eq.s32.totalorder %s21, 1
      %p39 = por %p37, %p38
      %p40 = scmp.ne.s32.totalorder %s29, %s30
      %p41 = scmp.eq.s32.totalorder %s21, 0
      %p42 = por %p40, %p41
      %p43 = scmp.ne.s32.totalorder %s29, %s30
      %p44 = scmp.eq.s32.totalorder %s22, 1
      %p45 = por %p43, %p44
      %p47 = scmp.ne.s32.totalorder %s30, %s46
      %p48 = scmp.eq.s32.totalorder %s22, 0
      %p49 = por %p47, %p48
      %s51 = sadd.s32 %s50, 1
      %p54 = scmp.eq.s32.totalorder %s16, 1
      %p55 = scmp.ne.s32.totalorder %s50, %s52
      %p56 = scmp.eq.s32.totalorder %s16, 0
      %p57 = por %p55, %p56
      %p58 = scmp.ne.s32.totalorder %s50, %s52
      %p59 = scmp.eq.s32.totalorder %s21, 1
      %p60 = por %p58, %p59
      %p61 = scmp.ne.s32.totalorder %s52, %s53
      %p62 = scmp.eq.s32.totalorder %s21, 0
      %p63 = por %p61, %p62
      %p64 = scmp.ne.s32.totalorder %s52, %s53
      %p65 = scmp.eq.s32.totalorder %s22, 1
      %p66 = por %p64, %p65
      %p68 = scmp.ne.s32.totalorder %s53, %s67
      %p69 = scmp.eq.s32.totalorder %s22, 0
      %p70 = por %p68, %p69
      %s72 = sadd.s32 %s71, 1
      %p75 = scmp.eq.s32.totalorder %s16, 1
      %p76 = scmp.ne.s32.totalorder %s71, %s73
      %p77 = scmp.eq.s32.totalorder %s16, 0
      %p78 = por %p76, %p77
      %p79 = scmp.ne.s32.totalorder %s71, %s73
      %p80 = scmp.eq.s32.totalorder %s21, 1
      %p81 = por %p79, %p80
      %p82 = scmp.ne.s32.totalorder %s73, %s74
      %p83 = scmp.eq.s32.totalorder %s21, 0
      %p84 = por %p82, %p83
      %p85 = scmp.ne.s32.totalorder %s73, %s74
      %p86 = scmp.eq.s32.totalorder %s22, 1
      %p87 = por %p85, %p86
      %p89 = scmp.ne.s32.totalorder %s74, %s88
      %p90 = scmp.eq.s32.totalorder %s22, 0
      %p91 = por %p89, %p90
      %s92 = ssub.s32 %s16, %s23
      %p93 = scmp.eq.s32.totalorder %s92, 0
      %s95 = sadd.s32 %s94, 1
      %s96 = scalar_select %p93, %s94, %s95
      %p99 = pneg %p93
      %p100 = scmp.eq.s32.totalorder %s16, 1
      %p101 = por %p99, %p100
      %p102 = scmp.ne.s32.totalorder %s94, %s97
      %p103 = scmp.eq.s32.totalorder %s16, 0
      %p104 = por %p102, %p103
      %p105 = scmp.ne.s32.totalorder %s94, %s97
      %p106 = scmp.eq.s32.totalorder %s21, 1
      %p107 = por %p105, %p106
      %p108 = scmp.ne.s32.totalorder %s97, %s98
      %p109 = scmp.eq.s32.totalorder %s21, 0
      %p110 = por %p108, %p109
      %p111 = scmp.ne.s32.totalorder %s97, %s98
      %p112 = scmp.eq.s32.totalorder %s22, 1
      %p113 = por %p111, %p112
      %p115 = scmp.ne.s32.totalorder %s98, %s114
      %p116 = scmp.eq.s32.totalorder %s22, 0
      %p117 = por %p115, %p116
      %p118 = scmp.le.s32.totalorder 1, %s16
      %p119 = scmp.lt.s32.totalorder %s16, 3
      %p120 = pnand %p118, %p119
      %p121 = pneg %p120
      // Predicated region
      $region9: #{tpu_custom_call.1} parent=5 // pred_check
        _
      $region10: #{tpu_custom_call.1} parent=5 // pred_check_branch
        %123 = sbr.rel (%p120) target = $region12
      $region11: #{tpu_custom_call.1} parent=5 // pred_region
        %s124 = ssub.s32 %s16, 1
        // Predicated region
        $region13: #{tpu_custom_call.1} parent=11 // pred_check
          %p125 = pneg %p63
        $region14: #{tpu_custom_call.1} parent=11 // pred_check_branch
          %127 = sbr.rel (%p125) target = $region16
        $region15: #{tpu_custom_call.1} parent=11 // pred_region
          %s129 = ssub.s32 512, 512
          %130 = vsyncadd [#allocation6], %s129
          %s131 = sshll.u32 [#allocation5], 4
          %s132 = int_to_ptr.vmem [resolvable:$true] %s131
          %137 = dma.hbm_to_vmem [thread:$0]  %s1, 512, %s132, [#allocation6], 64, 64, 4
        $region16: #{tpu_custom_call.1} parent=11 // pred_fallthru
          _
        // Predicated region
        $region17: #{tpu_custom_call.1} parent=11 // pred_check
          %p138 = pneg %p84
        $region18: #{tpu_custom_call.1} parent=11 // pred_check_branch
          %140 = sbr.rel (%p138) target = $region20
        $region19: #{tpu_custom_call.1} parent=11 // pred_region
          %s142 = ssub.s32 1024, 1024
          %143 = vsyncadd [#allocation6], %s142
          %s144 = sshll.u32 [#allocation7], 4
          %s145 = int_to_ptr.vmem [resolvable:$true] %s144
          %150 = dma.hbm_to_vmem [thread:$0]  %s2, 1024, %s145, [#allocation6], 64, 64, 4
        $region20: #{tpu_custom_call.1} parent=11 // pred_fallthru
          _
      $region12: #{tpu_custom_call.1} parent=5 // pred_fallthru
        _
      %p151 = scmp.lt.s32.totalorder %s16, 2
      // Predicated region
      $region21: #{tpu_custom_call.1} parent=5 // pred_check
        %p152 = pneg %p151
      $region22: #{tpu_custom_call.1} parent=5 // pred_check_branch
        %154 = sbr.rel (%p152) target = $region24
      $region23: #{tpu_custom_call.1} parent=5 // pred_region
        // Predicated region
        $region25: #{tpu_custom_call.1} parent=23 // pred_check
          %p155 = pneg %p36
        $region26: #{tpu_custom_call.1} parent=23 // pred_check_branch
          %157 = sbr.rel (%p155) target = $region28
        $region27: #{tpu_custom_call.1} parent=23 // pred_region
          %s158 = sand.u32 %s26, 1
          %s159 = scalar_lea.sflag [#allocation3], %s158
          %s160 = sand.u32 %s26, 1
          %s161 = smul.addr %s160, 256
          %s162 = scalar_lea.vmem [#allocation2], %s161
          %s163 = smul.u32 4, %s16
          %s165 = ssub.s32 4096, 4096
          %166 = vsyncadd %s159, %s165
          %s167 = smul.addr %s163, 8
          %s168 = smul.addr %s167, 128
          %s169 = scalar_lea.hbm %s0, %s168
          %s170 = sshll.u32 %s162, 4
          %s171 = int_to_ptr.vmem [resolvable:$true] %s170
          %176 = dma.hbm_to_vmem [thread:$0]  %s169, 4096, %s171, %s159, 128, 128, 8
        $region28: #{tpu_custom_call.1} parent=23 // pred_fallthru
          _
      $region24: #{tpu_custom_call.1} parent=5 // pred_fallthru
        _
      %p177 = scmp.le.s32.totalorder 1, %s16
      %p178 = scmp.lt.s32.totalorder %s16, 3
      %p179 = pnand %p177, %p178
      %p180 = pneg %p179
      // Predicated region
      $region29: #{tpu_custom_call.1} parent=5 // pred_check
        _
      $region30: #{tpu_custom_call.1} parent=5 // pred_check_branch
        %182 = sbr.rel (%p179) target = $region32
      $region31: #{tpu_custom_call.1} parent=5 // pred_region
        %s183 = ssub.s32 %s16, 1
        %s184 = sand.u32 %s29, 1
        %s185 = scalar_lea.sflag [#allocation3], %s184
        %s186 = sand.u32 %s29, 1
        %s187 = smul.addr %s186, 256
        %s188 = scalar_lea.vmem [#allocation2], %s187
        // Predicated region
        $region33: #{tpu_custom_call.1} parent=31 // pred_check
          %p189 = pneg %p42
        $region34: #{tpu_custom_call.1} parent=31 // pred_check_branch
          %191 = sbr.rel (%p189) target = $region36
        $region35: #{tpu_custom_call.1} parent=31 // pred_region
          %192 = dma.done %s185, 4096
        $region36: #{tpu_custom_call.1} parent=31 // pred_fallthru
          _
        // Predicated region
        $region37: #{tpu_custom_call.1} parent=31 // pred_check
          %p193 = pneg %p63
        $region38: #{tpu_custom_call.1} parent=31 // pred_check_branch
          %195 = sbr.rel (%p193) target = $region40
        $region39: #{tpu_custom_call.1} parent=31 // pred_region
          %196 = dma.done [#allocation6], 512
        $region40: #{tpu_custom_call.1} parent=31 // pred_fallthru
          _
        // Predicated region
        $region41: #{tpu_custom_call.1} parent=31 // pred_check
          %p197 = pneg %p84
        $region42: #{tpu_custom_call.1} parent=31 // pred_check_branch
          %199 = sbr.rel (%p197) target = $region44
        $region43: #{tpu_custom_call.1} parent=31 // pred_region
          %200 = dma.done [#allocation6], 1024
        $region44: #{tpu_custom_call.1} parent=31 // pred_fallthru
          _
        %s201 = sand.u32 %s29, 1
        %s202 = scalar_lea.sflag [#allocation3], %s201
        %s203 = sand.u32 %s29, 1
        %s204 = smul.addr %s203, 256
        %s205 = scalar_lea.vmem [#allocation2], %s204
        %p206 = pneg %p42
        %p207 = pneg %p39
        %p208 = pneg %p63
        %p209 = pneg %p60
        %p210 = pneg %p84
        %p211 = pneg %p81
        %p212 = pneg %p110
        %p213 = pneg %p107
        %s214 = sand.u32 %s97, 1
        %s215 = scalar_lea.sflag [#allocation4], %s214
        %s216 = sand.u32 %s97, 1
        %s217 = smul.addr %s216, 256
        %s218 = scalar_lea.vmem [#allocation8], %s217
        %s219 = smul.u32 4, %s21
        %s220 = smul.u32 4, %s21
        %v222 = vld [vmem:[%s188] sm:$0xff]
        %v223 = vld [vmem:[%s188 + $0x8] sm:$0xff]
        %v224 = vld [vmem:[%s188 + $0x10] sm:$0xff]
        %v225 = vld [vmem:[%s188 + $0x18] sm:$0xff]
        %v226 = vld [vmem:[%s188 + $0x20] sm:$0xff]
        %v227 = vld [vmem:[%s188 + $0x28] sm:$0xff]
        %v228 = vld [vmem:[%s188 + $0x30] sm:$0xff]
        %v229 = vld [vmem:[%s188 + $0x38] sm:$0xff]
        %v230 = vld [vmem:[%s188 + $0x40] sm:$0xff]
        %v231 = vld [vmem:[%s188 + $0x48] sm:$0xff]
        %v232 = vld [vmem:[%s188 + $0x50] sm:$0xff]
        %v233 = vld [vmem:[%s188 + $0x58] sm:$0xff]
        %v234 = vld [vmem:[%s188 + $0x60] sm:$0xff]
        %v235 = vld [vmem:[%s188 + $0x68] sm:$0xff]
        %v236 = vld [vmem:[%s188 + $0x70] sm:$0xff]
        %v237 = vld [vmem:[%s188 + $0x78] sm:$0xff]
        %v238 = vld [vmem:[%s188 + $0x80] sm:$0xff]
        %v239 = vld [vmem:[%s188 + $0x88] sm:$0xff]
        %v240 = vld [vmem:[%s188 + $0x90] sm:$0xff]
        %v241 = vld [vmem:[%s188 + $0x98] sm:$0xff]
        %v242 = vld [vmem:[%s188 + $0xa0] sm:$0xff]
        %v243 = vld [vmem:[%s188 + $0xa8] sm:$0xff]
        %v244 = vld [vmem:[%s188 + $0xb0] sm:$0xff]
        %v245 = vld [vmem:[%s188 + $0xb8] sm:$0xff]
        %v246 = vld [vmem:[%s188 + $0xc0] sm:$0xff]
        %v247 = vld [vmem:[%s188 + $0xc8] sm:$0xff]
        %v248 = vld [vmem:[%s188 + $0xd0] sm:$0xff]
        %v249 = vld [vmem:[%s188 + $0xd8] sm:$0xff]
        %v250 = vld [vmem:[%s188 + $0xe0] sm:$0xff]
        %v251 = vld [vmem:[%s188 + $0xe8] sm:$0xff]
        %v252 = vld [vmem:[%s188 + $0xf0] sm:$0xff]
        %v253 = vld [vmem:[%s188 + $0xf8] sm:$0xff]
        %v254 = vld [vmem:[#allocation5] sm:$0xf]
        %v255 = vld [vmem:[#allocation5 + $0x4] sm:$0xf]
        %v256 = vld [vmem:[#allocation5 + $0x8] sm:$0xf]
        %v257 = vld [vmem:[#allocation5 + $0xc] sm:$0xf]
        %v258 = vld [vmem:[#allocation5 + $0x10] sm:$0xf]
        %v259 = vld [vmem:[#allocation5 + $0x14] sm:$0xf]
        %v260 = vld [vmem:[#allocation5 + $0x18] sm:$0xf]
        %v261 = vld [vmem:[#allocation5 + $0x1c] sm:$0xf]
        %v262 = vld [vmem:[#allocation7] sm:$0xf]
        %v263 = vld [vmem:[#allocation7 + $0x4] sm:$0xf]
        %v264 = vld [vmem:[#allocation7 + $0x8] sm:$0xf]
        %v265 = vld [vmem:[#allocation7 + $0xc] sm:$0xf]
        %v266 = vld [vmem:[#allocation7 + $0x10] sm:$0xf]
        %v267 = vld [vmem:[#allocation7 + $0x14] sm:$0xf]
        %v268 = vld [vmem:[#allocation7 + $0x18] sm:$0xf]
        %v269 = vld [vmem:[#allocation7 + $0x1c] sm:$0xf]
        %v270 = vld [vmem:[#allocation7 + $0x20] sm:$0xf]
        %v271 = vld [vmem:[#allocation7 + $0x24] sm:$0xf]
        %v272 = vld [vmem:[#allocation7 + $0x28] sm:$0xf]
        %v273 = vld [vmem:[#allocation7 + $0x2c] sm:$0xf]
        %v274 = vld [vmem:[#allocation7 + $0x30] sm:$0xf]
        %v275 = vld [vmem:[#allocation7 + $0x34] sm:$0xf]
        %v276 = vld [vmem:[#allocation7 + $0x38] sm:$0xf]
        %v277 = vld [vmem:[#allocation7 + $0x3c] sm:$0xf]
        %v278 = vpack.c.bf16 %v223, %v222
        %v279 = vpack.c.bf16 %v225, %v224
        %v280 = vpack.c.bf16 %v227, %v226
        %v281 = vpack.c.bf16 %v229, %v228
        %v282 = vpack.c.bf16 %v231, %v230
        %v283 = vpack.c.bf16 %v233, %v232
        %v284 = vpack.c.bf16 %v235, %v234
        %v285 = vpack.c.bf16 %v237, %v236
        %v286 = vpack.c.bf16 %v239, %v238
        %v287 = vpack.c.bf16 %v241, %v240
        %v288 = vpack.c.bf16 %v243, %v242
        %v289 = vpack.c.bf16 %v245, %v244
        %v290 = vpack.c.bf16 %v247, %v246
        %v291 = vpack.c.bf16 %v249, %v248
        %v292 = vpack.c.bf16 %v251, %v250
        %v293 = vpack.c.bf16 %v253, %v252
        %v310 = vunpack.c.l.b16 %v262
        %v311 = vunpack.c.l.b16 %v263
        %v312 = vunpack.c.l.b16 %v264
        %v313 = vunpack.c.l.b16 %v265
        %v314 = vunpack.c.l.b16 %v266
        %v315 = vunpack.c.l.b16 %v267
        %v316 = vunpack.c.l.b16 %v268
        %v317 = vunpack.c.l.b16 %v269
        %v318 = vunpack.c.l.b16 %v270
        %v319 = vunpack.c.l.b16 %v271
        %v320 = vunpack.c.l.b16 %v272
        %v321 = vunpack.c.l.b16 %v273
        %v322 = vunpack.c.l.b16 %v274
        %v323 = vunpack.c.l.b16 %v275
        %v324 = vunpack.c.l.b16 %v276
        %v325 = vunpack.c.l.b16 %v277
        %v326 = vpack.c.b16 %v311, %v310
        %v327 = vpack.c.b16 %v313, %v312
        %v328 = vpack.c.b16 %v315, %v314
        %v329 = vpack.c.b16 %v317, %v316
        %v330 = vpack.c.b16 %v319, %v318
        %v331 = vpack.c.b16 %v321, %v320
        %v332 = vpack.c.b16 %v323, %v322
        %v333 = vpack.c.b16 %v325, %v324
        %342 = vmatprep.subr.bf16.mxu0 0
        %343 = vmatpush1.bf16.msra.mxu0 %v333
        %344 = vmatprep.subr.bf16.mxu0 0
        %345 = vmatpush1.bf16.msra.mxu0 %v332
        %346 = vmatprep.subr.bf16.mxu0 0
        %347 = vmatpush1.bf16.msra.mxu0 %v331
        %348 = vmatprep.subr.bf16.mxu0 0
        %349 = vmatpush1.bf16.msra.mxu0 %v330
        %350 = vmatprep.subr.bf16.mxu0 0
        %351 = vmatpush1.bf16.msra.mxu0 %v329
        %352 = vmatprep.subr.bf16.mxu0 0
        %353 = vmatpush1.bf16.msra.mxu0 %v328
        %354 = vmatprep.subr.bf16.mxu0 0
        %355 = vmatpush1.bf16.msra.mxu0 %v327
        %356 = vmatprep.subr.bf16.mxu0 0
        %357 = vmatpush1.bf16.msra.mxu0 %v326
        %358 = vmatprep.subr.bf16.mxu0 0
        %359 = vmatpush2.bf16.msra.mxu0 0
        %360 = vmatprep.subr.bf16.mxu0 0
        %361 = vmatpush2.bf16.msra.mxu0 0
        %362 = vmatprep.subr.bf16.mxu0 0
        %363 = vmatpush2.bf16.msra.mxu0 0
        %364 = vmatprep.subr.bf16.mxu0 0
        %365 = vmatpush2.bf16.msra.mxu0 0
        %366 = vmatprep.subr.bf16.mxu0 0
        %367 = vmatpush2.bf16.msra.mxu0 0
        %368 = vmatprep.subr.bf16.mxu0 0
        %369 = vmatpush2.bf16.msra.mxu0 0
        %370 = vmatprep.subr.bf16.mxu0 0
        %371 = vmatpush2.bf16.msra.mxu0 0
        %372 = vmatprep.subr.bf16.mxu0 0
        %373 = vmatpush2.bf16.msra.mxu0 0
        %374 = vmatprep.mubr.bf16.mxu0 0
        %375 = vmatmul.mubr.bf16.gmra.mxu0 %v278
        %v376 = vpop.f32.mrf.mxu0
        %v377 = vadd.f32 0.0, %v376
        %v378 = vpop.f32.mrf.mxu0
        %v379 = vpop.f32.mrf.mxu0
        %v380 = vadd.f32 0.0, %v379
        %v381 = vpop.f32.mrf.mxu0
        %382 = vmatprep.mubr.bf16.mxu0 0
        %383 = vmatmul.mubr.bf16.gmra.mxu0 %v279
        %v384 = vpop.f32.mrf.mxu0
        %v385 = vadd.f32 0.0, %v384
        %v386 = vpop.f32.mrf.mxu0
        %v387 = vpop.f32.mrf.mxu0
        %v388 = vadd.f32 0.0, %v387
        %v389 = vpop.f32.mrf.mxu0
        %390 = vmatprep.mubr.bf16.mxu0 0
        %391 = vmatmul.mubr.bf16.gmra.mxu0 %v280
        %v392 = vpop.f32.mrf.mxu0
        %v393 = vadd.f32 0.0, %v392
        %v394 = vpop.f32.mrf.mxu0
        %v395 = vpop.f32.mrf.mxu0
        %v396 = vadd.f32 0.0, %v395
        %v397 = vpop.f32.mrf.mxu0
        %398 = vmatprep.mubr.bf16.mxu0 0
        %399 = vmatmul.mubr.bf16.gmra.mxu0 %v281
        %v400 = vpop.f32.mrf.mxu0
        %v401 = vadd.f32 0.0, %v400
        %v402 = vpop.f32.mrf.mxu0
        %v403 = vpop.f32.mrf.mxu0
        %v404 = vadd.f32 0.0, %v403
        %v405 = vpop.f32.mrf.mxu0
        %406 = vmatprep.mubr.bf16.mxu0 0
        %407 = vmatmul.mubr.bf16.gmra.mxu0 %v282
        %v408 = vpop.f32.mrf.mxu0
        %v409 = vadd.f32 0.0, %v408
        %v410 = vpop.f32.mrf.mxu0
        %v411 = vpop.f32.mrf.mxu0
        %v412 = vadd.f32 0.0, %v411
        %v413 = vpop.f32.mrf.mxu0
        %414 = vmatprep.mubr.bf16.mxu0 0
        %415 = vmatmul.mubr.bf16.gmra.mxu0 %v283
        %v416 = vpop.f32.mrf.mxu0
        %v417 = vadd.f32 0.0, %v416
        %v418 = vpop.f32.mrf.mxu0
        %v419 = vpop.f32.mrf.mxu0
        %v420 = vadd.f32 0.0, %v419
        %v421 = vpop.f32.mrf.mxu0
        %422 = vmatprep.mubr.bf16.mxu0 0
        %423 = vmatmul.mubr.bf16.gmra.mxu0 %v284
        %v424 = vpop.f32.mrf.mxu0
        %v425 = vadd.f32 0.0, %v424
        %v426 = vpop.f32.mrf.mxu0
        %v427 = vpop.f32.mrf.mxu0
        %v428 = vadd.f32 0.0, %v427
        %v429 = vpop.f32.mrf.mxu0
        %430 = vmatprep.mubr.bf16.mxu0 0
        %431 = vmatmul.mubr.bf16.gmra.mxu0 %v285
        %v432 = vpop.f32.mrf.mxu0
        %v433 = vadd.f32 0.0, %v432
        %v434 = vpop.f32.mrf.mxu0
        %v435 = vpop.f32.mrf.mxu0
        %v436 = vadd.f32 0.0, %v435
        %v437 = vpop.f32.mrf.mxu0
        %438 = vmatprep.mubr.bf16.mxu0 0
        %439 = vmatmul.mubr.bf16.gmra.mxu0 %v286
        %v440 = vpop.f32.mrf.mxu0
        %v441 = vadd.f32 0.0, %v440
        %v442 = vpop.f32.mrf.mxu0
        %v443 = vpop.f32.mrf.mxu0
        %v444 = vadd.f32 0.0, %v443
        %v445 = vpop.f32.mrf.mxu0
        %446 = vmatprep.mubr.bf16.mxu0 0
        %447 = vmatmul.mubr.bf16.gmra.mxu0 %v287
        %v448 = vpop.f32.mrf.mxu0
        %v449 = vadd.f32 0.0, %v448
        %v450 = vpop.f32.mrf.mxu0
        %v451 = vpop.f32.mrf.mxu0
        %v452 = vadd.f32 0.0, %v451
        %v453 = vpop.f32.mrf.mxu0
        %454 = vmatprep.mubr.bf16.mxu0 0
        %455 = vmatmul.mubr.bf16.gmra.mxu0 %v288
        %v456 = vpop.f32.mrf.mxu0
        %v457 = vadd.f32 0.0, %v456
        %v458 = vpop.f32.mrf.mxu0
        %v459 = vpop.f32.mrf.mxu0
        %v460 = vadd.f32 0.0, %v459
        %v461 = vpop.f32.mrf.mxu0
        %462 = vmatprep.mubr.bf16.mxu0 0
        %463 = vmatmul.mubr.bf16.gmra.mxu0 %v289
        %v464 = vpop.f32.mrf.mxu0
        %v465 = vadd.f32 0.0, %v464
        %v466 = vpop.f32.mrf.mxu0
        %v467 = vpop.f32.mrf.mxu0
        %v468 = vadd.f32 0.0, %v467
        %v469 = vpop.f32.mrf.mxu0
        %470 = vmatprep.mubr.bf16.mxu0 0
        %471 = vmatmul.mubr.bf16.gmra.mxu0 %v290
        %v472 = vpop.f32.mrf.mxu0
        %v473 = vadd.f32 0.0, %v472
        %v474 = vpop.f32.mrf.mxu0
        %v475 = vpop.f32.mrf.mxu0
        %v476 = vadd.f32 0.0, %v475
        %v477 = vpop.f32.mrf.mxu0
        %478 = vmatprep.mubr.bf16.mxu0 0
        %479 = vmatmul.mubr.bf16.gmra.mxu0 %v291
        %v480 = vpop.f32.mrf.mxu0
        %v481 = vadd.f32 0.0, %v480
        %v482 = vpop.f32.mrf.mxu0
        %v483 = vpop.f32.mrf.mxu0
        %v484 = vadd.f32 0.0, %v483
        %v485 = vpop.f32.mrf.mxu0
        %486 = vmatprep.mubr.bf16.mxu0 0
        %487 = vmatmul.mubr.bf16.gmra.mxu0 %v292
        %v488 = vpop.f32.mrf.mxu0
        %v489 = vadd.f32 0.0, %v488
        %v490 = vpop.f32.mrf.mxu0
        %v491 = vpop.f32.mrf.mxu0
        %v492 = vadd.f32 0.0, %v491
        %v493 = vpop.f32.mrf.mxu0
        %494 = vmatprep.mubr.bf16.mxu0 0
        %495 = vmatmul.mubr.bf16.gmra.mxu0 %v293
        %v496 = vpop.f32.mrf.mxu0
        %v497 = vadd.f32 0.0, %v496
        %v498 = vpop.f32.mrf.mxu0
        %v499 = vpop.f32.mrf.mxu0
        %v500 = vadd.f32 0.0, %v499
        %v501 = vpop.f32.mrf.mxu0
        %502 = vdwg.mxu0
        %v503 = vpack.c.bf16 %v380, %v377
        %v504 = vpack.c.bf16 %v388, %v385
        %v505 = vpack.c.bf16 %v396, %v393
        %v506 = vpack.c.bf16 %v404, %v401
        %v507 = vpack.c.bf16 %v412, %v409
        %v508 = vpack.c.bf16 %v420, %v417
        %v509 = vpack.c.bf16 %v428, %v425
        %v510 = vpack.c.bf16 %v436, %v433
        %v511 = vpack.c.bf16 %v444, %v441
        %v512 = vpack.c.bf16 %v452, %v449
        %v513 = vpack.c.bf16 %v460, %v457
        %v514 = vpack.c.bf16 %v468, %v465
        %v515 = vpack.c.bf16 %v476, %v473
        %v516 = vpack.c.bf16 %v484, %v481
        %v517 = vpack.c.bf16 %v492, %v489
        %v518 = vpack.c.bf16 %v500, %v497
        %v527 = vunpack.c.l.b16 %v254
        %v528 = vunpack.c.l.b16 %v255
        %v529 = vunpack.c.l.b16 %v256
        %v530 = vunpack.c.l.b16 %v257
        %v531 = vunpack.c.l.b16 %v258
        %v532 = vunpack.c.l.b16 %v259
        %v533 = vunpack.c.l.b16 %v260
        %v534 = vunpack.c.l.b16 %v261
        %v535 = vpack.c.b16 %v528, %v527
        %v536 = vpack.c.b16 %v530, %v529
        %v537 = vpack.c.b16 %v532, %v531
        %v538 = vpack.c.b16 %v534, %v533
        %vm539 = vcmask 523264
        %v541 = vsel %vm539, %v535, 0
        %v544 = vsel %vm539, %v536, 0
        %v547 = vsel %vm539, %v537, 0
        %v550 = vsel %vm539, %v538, 0
        %552 = vmatprep.subr.bf16.mxu0 0
        %553 = vmatpush1.bf16.msra.mxu0 0
        %554 = vmatprep.subr.bf16.mxu0 0
        %555 = vmatpush1.bf16.msra.mxu0 0
        %556 = vmatprep.subr.bf16.mxu0 0
        %557 = vmatpush1.bf16.msra.mxu0 0
        %558 = vmatprep.subr.bf16.mxu0 0
        %559 = vmatpush1.bf16.msra.mxu0 0
        %560 = vmatprep.subr.bf16.mxu0 0
        %561 = vmatpush1.bf16.msra.mxu0 %v506
        %562 = vmatprep.subr.bf16.mxu0 0
        %563 = vmatpush1.bf16.msra.mxu0 %v505
        %564 = vmatprep.subr.bf16.mxu0 0
        %565 = vmatpush1.bf16.msra.mxu0 %v504
        %566 = vmatprep.subr.bf16.mxu0 0
        %567 = vmatpush1.bf16.msra.mxu0 %v503
        %568 = vmatprep.subr.bf16.mxu0 0
        %569 = vmatpush2.bf16.msra.mxu0 0
        %570 = vmatprep.subr.bf16.mxu0 0
        %571 = vmatpush2.bf16.msra.mxu0 0
        %572 = vmatprep.subr.bf16.mxu0 0
        %573 = vmatpush2.bf16.msra.mxu0 0
        %574 = vmatprep.subr.bf16.mxu0 0
        %575 = vmatpush2.bf16.msra.mxu0 0
        %576 = vmatprep.subr.bf16.mxu0 0
        %577 = vmatpush2.bf16.msra.mxu0 0
        %578 = vmatprep.subr.bf16.mxu0 0
        %579 = vmatpush2.bf16.msra.mxu0 0
        %580 = vmatprep.subr.bf16.mxu0 0
        %581 = vmatpush2.bf16.msra.mxu0 0
        %582 = vmatprep.subr.bf16.mxu0 0
        %583 = vmatpush2.bf16.msra.mxu0 0
        %584 = vmatprep.mubr.bf16.mxu0 0
        %585 = vmatmul.mubr.bf16.gmra.mxu0 %v541
        %v586 = vpop.f32.mrf.mxu0
        %v587 = vadd.f32 0.0, %v586
        %v588 = vpop.f32.mrf.mxu0
        %v589 = vpop.f32.mrf.mxu0
        %v590 = vadd.f32 0.0, %v589
        %v591 = vpop.f32.mrf.mxu0
        %592 = vmatprep.mubr.bf16.mxu0 0
        %593 = vmatmul.mubr.bf16.gmra.mxu0 %v544
        %v594 = vpop.f32.mrf.mxu0
        %v595 = vadd.f32 0.0, %v594
        %v596 = vpop.f32.mrf.mxu0
        %v597 = vpop.f32.mrf.mxu0
        %v598 = vadd.f32 0.0, %v597
        %v599 = vpop.f32.mrf.mxu0
        %600 = vmatprep.mubr.bf16.mxu0 0
        %601 = vmatmul.mubr.bf16.gmra.mxu0 %v547
        %v602 = vpop.f32.mrf.mxu0
        %v603 = vadd.f32 0.0, %v602
        %v604 = vpop.f32.mrf.mxu0
        %v605 = vpop.f32.mrf.mxu0
        %v606 = vadd.f32 0.0, %v605
        %v607 = vpop.f32.mrf.mxu0
        %608 = vmatprep.mubr.bf16.mxu0 0
        %609 = vmatmul.mubr.bf16.gmra.mxu0 %v550
        %v610 = vpop.f32.mrf.mxu0
        %v611 = vadd.f32 0.0, %v610
        %v612 = vpop.f32.mrf.mxu0
        %v613 = vpop.f32.mrf.mxu0
        %v614 = vadd.f32 0.0, %v613
        %v615 = vpop.f32.mrf.mxu0
        %616 = vdwg.mxu0
        %v617 = vsub.f32 %v222, %v587
        %v618 = vsub.f32 %v223, %v590
        %v619 = vsub.f32 %v224, %v595
        %v620 = vsub.f32 %v225, %v598
        %v621 = vsub.f32 %v226, %v603
        %v622 = vsub.f32 %v227, %v606
        %v623 = vsub.f32 %v228, %v611
        %v624 = vsub.f32 %v229, %v614
        %v625 = vand.u32 2147483647, %v617
        %v626 = vand.u32 2147483647, %v618
        %v627 = vand.u32 2147483647, %v619
        %v628 = vand.u32 2147483647, %v620
        %v629 = vand.u32 2147483647, %v621
        %v630 = vand.u32 2147483647, %v622
        %v631 = vand.u32 2147483647, %v623
        %v632 = vand.u32 2147483647, %v624
        %vm633 = vcmp.gt.f32.partialorder %v625, 0.039215688
        %vm634 = vcmp.gt.f32.partialorder %v626, 0.039215688
        %vm635 = vcmp.gt.f32.partialorder %v627, 0.039215688
        %vm636 = vcmp.gt.f32.partialorder %v628, 0.039215688
        %vm637 = vcmp.gt.f32.partialorder %v629, 0.039215688
        %vm638 = vcmp.gt.f32.partialorder %v630, 0.039215688
        %vm639 = vcmp.gt.f32.partialorder %v631, 0.039215688
        %vm640 = vcmp.gt.f32.partialorder %v632, 0.039215688
        %v641 = vsel %vm633, 1, 0
        %v642 = vsel %vm634, 1, 0
        %v643 = vsel %vm635, 1, 0
        %v644 = vsel %vm636, 1, 0
        %v645 = vsel %vm637, 1, 0
        %v646 = vsel %vm638, 1, 0
        %v647 = vsel %vm639, 1, 0
        %v648 = vsel %vm640, 1, 0
        %v649 = vcvt.s32.f32 %v641
        %v650 = vcvt.s32.f32 %v642
        %v651 = vcvt.s32.f32 %v643
        %v652 = vcvt.s32.f32 %v644
        %v653 = vcvt.s32.f32 %v645
        %v654 = vcvt.s32.f32 %v646
        %v655 = vcvt.s32.f32 %v647
        %v656 = vcvt.s32.f32 %v648
        %v657 = vpack.c.bf16 %v650, %v649
        %v658 = vpack.c.bf16 %v652, %v651
        %v659 = vpack.c.bf16 %v654, %v653
        %v660 = vpack.c.bf16 %v656, %v655
        %661 = vmatprep.subr.bf16.mxu0 0
        %662 = vmatpush1.bf16.msra.mxu0 0
        %663 = vmatprep.subr.bf16.mxu0 0
        %664 = vmatpush1.bf16.msra.mxu0 0
        %665 = vmatprep.subr.bf16.mxu0 0
        %666 = vmatpush1.bf16.msra.mxu0 0
        %667 = vmatprep.subr.bf16.mxu0 0
        %668 = vmatpush1.bf16.msra.mxu0 0
        %669 = vmatprep.subr.bf16.mxu0 0
        %670 = vmatpush1.bf16.msra.mxu0 %v510
        %671 = vmatprep.subr.bf16.mxu0 0
        %672 = vmatpush1.bf16.msra.mxu0 %v509
        %673 = vmatprep.subr.bf16.mxu0 0
        %674 = vmatpush1.bf16.msra.mxu0 %v508
        %675 = vmatprep.subr.bf16.mxu0 0
        %676 = vmatpush1.bf16.msra.mxu0 %v507
        %677 = vmatprep.subr.bf16.mxu0 0
        %678 = vmatpush2.bf16.msra.mxu0 0
        %679 = vmatprep.subr.bf16.mxu0 0
        %680 = vmatpush2.bf16.msra.mxu0 0
        %681 = vmatprep.subr.bf16.mxu0 0
        %682 = vmatpush2.bf16.msra.mxu0 0
        %683 = vmatprep.subr.bf16.mxu0 0
        %684 = vmatpush2.bf16.msra.mxu0 0
        %685 = vmatprep.subr.bf16.mxu0 0
        %686 = vmatpush2.bf16.msra.mxu0 0
        %687 = vmatprep.subr.bf16.mxu0 0
        %688 = vmatpush2.bf16.msra.mxu0 0
        %689 = vmatprep.subr.bf16.mxu0 0
        %690 = vmatpush2.bf16.msra.mxu0 0
        %691 = vmatprep.subr.bf16.mxu0 0
        %692 = vmatpush2.bf16.msra.mxu0 0
        %693 = vmatprep.mubr.bf16.mxu0 0
        %694 = vmatmul.mubr.bf16.gmra.mxu0 %v541
        %v695 = vpop.f32.mrf.mxu0
        %v696 = vadd.f32 0.0, %v695
        %v697 = vpop.f32.mrf.mxu0
        %v698 = vpop.f32.mrf.mxu0
        %v699 = vadd.f32 0.0, %v698
        %v700 = vpop.f32.mrf.mxu0
        %701 = vmatprep.mubr.bf16.mxu0 0
        %702 = vmatmul.mubr.bf16.gmra.mxu0 %v544
        %v703 = vpop.f32.mrf.mxu0
        %v704 = vadd.f32 0.0, %v703
        %v705 = vpop.f32.mrf.mxu0
        %v706 = vpop.f32.mrf.mxu0
        %v707 = vadd.f32 0.0, %v706
        %v708 = vpop.f32.mrf.mxu0
        %709 = vmatprep.mubr.bf16.mxu0 0
        %710 = vmatmul.mubr.bf16.gmra.mxu0 %v547
        %v711 = vpop.f32.mrf.mxu0
        %v712 = vadd.f32 0.0, %v711
        %v713 = vpop.f32.mrf.mxu0
        %v714 = vpop.f32.mrf.mxu0
        %v715 = vadd.f32 0.0, %v714
        %v716 = vpop.f32.mrf.mxu0
        %717 = vmatprep.mubr.bf16.mxu0 0
        %718 = vmatmul.mubr.bf16.gmra.mxu0 %v550
        %v719 = vpop.f32.mrf.mxu0
        %v720 = vadd.f32 0.0, %v719
        %v721 = vpop.f32.mrf.mxu0
        %v722 = vpop.f32.mrf.mxu0
        %v723 = vadd.f32 0.0, %v722
        %v724 = vpop.f32.mrf.mxu0
        %725 = vdwg.mxu0
        %v726 = vsub.f32 %v230, %v696
        %v727 = vsub.f32 %v231, %v699
        %v728 = vsub.f32 %v232, %v704
        %v729 = vsub.f32 %v233, %v707
        %v730 = vsub.f32 %v234, %v712
        %v731 = vsub.f32 %v235, %v715
        %v732 = vsub.f32 %v236, %v720
        %v733 = vsub.f32 %v237, %v723
        %v734 = vand.u32 2147483647, %v726
        %v735 = vand.u32 2147483647, %v727
        %v736 = vand.u32 2147483647, %v728
        %v737 = vand.u32 2147483647, %v729
        %v738 = vand.u32 2147483647, %v730
        %v739 = vand.u32 2147483647, %v731
        %v740 = vand.u32 2147483647, %v732
        %v741 = vand.u32 2147483647, %v733
        %vm742 = vcmp.gt.f32.partialorder %v734, 0.039215688
        %vm743 = vcmp.gt.f32.partialorder %v735, 0.039215688
        %vm744 = vcmp.gt.f32.partialorder %v736, 0.039215688
        %vm745 = vcmp.gt.f32.partialorder %v737, 0.039215688
        %vm746 = vcmp.gt.f32.partialorder %v738, 0.039215688
        %vm747 = vcmp.gt.f32.partialorder %v739, 0.039215688
        %vm748 = vcmp.gt.f32.partialorder %v740, 0.039215688
        %vm749 = vcmp.gt.f32.partialorder %v741, 0.039215688
        %v750 = vsel %vm742, 1, 0
        %v751 = vsel %vm743, 1, 0
        %v752 = vsel %vm744, 1, 0
        %v753 = vsel %vm745, 1, 0
        %v754 = vsel %vm746, 1, 0
        %v755 = vsel %vm747, 1, 0
        %v756 = vsel %vm748, 1, 0
        %v757 = vsel %vm749, 1, 0
        %v758 = vcvt.s32.f32 %v750
        %v759 = vcvt.s32.f32 %v751
        %v760 = vcvt.s32.f32 %v752
        %v761 = vcvt.s32.f32 %v753
        %v762 = vcvt.s32.f32 %v754
        %v763 = vcvt.s32.f32 %v755
        %v764 = vcvt.s32.f32 %v756
        %v765 = vcvt.s32.f32 %v757
        %v766 = vpack.c.bf16 %v759, %v758
        %v767 = vpack.c.bf16 %v761, %v760
        %v768 = vpack.c.bf16 %v763, %v762
        %v769 = vpack.c.bf16 %v765, %v764
        %770 = vmatprep.subr.bf16.mxu0 0
        %771 = vmatpush1.bf16.msra.mxu0 0
        %772 = vmatprep.subr.bf16.mxu0 0
        %773 = vmatpush1.bf16.msra.mxu0 0
        %774 = vmatprep.subr.bf16.mxu0 0
        %775 = vmatpush1.bf16.msra.mxu0 0
        %776 = vmatprep.subr.bf16.mxu0 0
        %777 = vmatpush1.bf16.msra.mxu0 0
        %778 = vmatprep.subr.bf16.mxu0 0
        %779 = vmatpush1.bf16.msra.mxu0 %v514
        %780 = vmatprep.subr.bf16.mxu0 0
        %781 = vmatpush1.bf16.msra.mxu0 %v513
        %782 = vmatprep.subr.bf16.mxu0 0
        %783 = vmatpush1.bf16.msra.mxu0 %v512
        %784 = vmatprep.subr.bf16.mxu0 0
        %785 = vmatpush1.bf16.msra.mxu0 %v511
        %786 = vmatprep.subr.bf16.mxu0 0
        %787 = vmatpush2.bf16.msra.mxu0 0
        %788 = vmatprep.subr.bf16.mxu0 0
        %789 = vmatpush2.bf16.msra.mxu0 0
        %790 = vmatprep.subr.bf16.mxu0 0
        %791 = vmatpush2.bf16.msra.mxu0 0
        %792 = vmatprep.subr.bf16.mxu0 0
        %793 = vmatpush2.bf16.msra.mxu0 0
        %794 = vmatprep.subr.bf16.mxu0 0
        %795 = vmatpush2.bf16.msra.mxu0 0
        %796 = vmatprep.subr.bf16.mxu0 0
        %797 = vmatpush2.bf16.msra.mxu0 0
        %798 = vmatprep.subr.bf16.mxu0 0
        %799 = vmatpush2.bf16.msra.mxu0 0
        %800 = vmatprep.subr.bf16.mxu0 0
        %801 = vmatpush2.bf16.msra.mxu0 0
        %802 = vmatprep.mubr.bf16.mxu0 0
        %803 = vmatmul.mubr.bf16.gmra.mxu0 %v541
        %v804 = vpop.f32.mrf.mxu0
        %v805 = vadd.f32 0.0, %v804
        %v806 = vpop.f32.mrf.mxu0
        %v807 = vpop.f32.mrf.mxu0
        %v808 = vadd.f32 0.0, %v807
        %v809 = vpop.f32.mrf.mxu0
        %810 = vmatprep.mubr.bf16.mxu0 0
        %811 = vmatmul.mubr.bf16.gmra.mxu0 %v544
        %v812 = vpop.f32.mrf.mxu0
        %v813 = vadd.f32 0.0, %v812
        %v814 = vpop.f32.mrf.mxu0
        %v815 = vpop.f32.mrf.mxu0
        %v816 = vadd.f32 0.0, %v815
        %v817 = vpop.f32.mrf.mxu0
        %818 = vmatprep.mubr.bf16.mxu0 0
        %819 = vmatmul.mubr.bf16.gmra.mxu0 %v547
        %v820 = vpop.f32.mrf.mxu0
        %v821 = vadd.f32 0.0, %v820
        %v822 = vpop.f32.mrf.mxu0
        %v823 = vpop.f32.mrf.mxu0
        %v824 = vadd.f32 0.0, %v823
        %v825 = vpop.f32.mrf.mxu0
        %826 = vmatprep.mubr.bf16.mxu0 0
        %827 = vmatmul.mubr.bf16.gmra.mxu0 %v550
        %v828 = vpop.f32.mrf.mxu0
        %v829 = vadd.f32 0.0, %v828
        %v830 = vpop.f32.mrf.mxu0
        %v831 = vpop.f32.mrf.mxu0
        %v832 = vadd.f32 0.0, %v831
        %v833 = vpop.f32.mrf.mxu0
        %834 = vdwg.mxu0
        %v835 = vsub.f32 %v238, %v805
        %v836 = vsub.f32 %v239, %v808
        %v837 = vsub.f32 %v240, %v813
        %v838 = vsub.f32 %v241, %v816
        %v839 = vsub.f32 %v242, %v821
        %v840 = vsub.f32 %v243, %v824
        %v841 = vsub.f32 %v244, %v829
        %v842 = vsub.f32 %v245, %v832
        %v843 = vand.u32 2147483647, %v835
        %v844 = vand.u32 2147483647, %v836
        %v845 = vand.u32 2147483647, %v837
        %v846 = vand.u32 2147483647, %v838
        %v847 = vand.u32 2147483647, %v839
        %v848 = vand.u32 2147483647, %v840
        %v849 = vand.u32 2147483647, %v841
        %v850 = vand.u32 2147483647, %v842
        %vm851 = vcmp.gt.f32.partialorder %v843, 0.039215688
        %vm852 = vcmp.gt.f32.partialorder %v844, 0.039215688
        %vm853 = vcmp.gt.f32.partialorder %v845, 0.039215688
        %vm854 = vcmp.gt.f32.partialorder %v846, 0.039215688
        %vm855 = vcmp.gt.f32.partialorder %v847, 0.039215688
        %vm856 = vcmp.gt.f32.partialorder %v848, 0.039215688
        %vm857 = vcmp.gt.f32.partialorder %v849, 0.039215688
        %vm858 = vcmp.gt.f32.partialorder %v850, 0.039215688
        %v859 = vsel %vm851, 1, 0
        %v860 = vsel %vm852, 1, 0
        %v861 = vsel %vm853, 1, 0
        %v862 = vsel %vm854, 1, 0
        %v863 = vsel %vm855, 1, 0
        %v864 = vsel %vm856, 1, 0
        %v865 = vsel %vm857, 1, 0
        %v866 = vsel %vm858, 1, 0
        %v867 = vcvt.s32.f32 %v859
        %v868 = vcvt.s32.f32 %v860
        %v869 = vcvt.s32.f32 %v861
        %v870 = vcvt.s32.f32 %v862
        %v871 = vcvt.s32.f32 %v863
        %v872 = vcvt.s32.f32 %v864
        %v873 = vcvt.s32.f32 %v865
        %v874 = vcvt.s32.f32 %v866
        %v875 = vpack.c.bf16 %v868, %v867
        %v876 = vpack.c.bf16 %v870, %v869
        %v877 = vpack.c.bf16 %v872, %v871
        %v878 = vpack.c.bf16 %v874, %v873
        %879 = vmatprep.subr.bf16.mxu0 0
        %880 = vmatpush1.bf16.msra.mxu0 0
        %881 = vmatprep.subr.bf16.mxu0 0
        %882 = vmatpush1.bf16.msra.mxu0 0
        %883 = vmatprep.subr.bf16.mxu0 0
        %884 = vmatpush1.bf16.msra.mxu0 0
        %885 = vmatprep.subr.bf16.mxu0 0
        %886 = vmatpush1.bf16.msra.mxu0 0
        %887 = vmatprep.subr.bf16.mxu0 0
        %888 = vmatpush1.bf16.msra.mxu0 %v518
        %889 = vmatprep.subr.bf16.mxu0 0
        %890 = vmatpush1.bf16.msra.mxu0 %v517
        %891 = vmatprep.subr.bf16.mxu0 0
        %892 = vmatpush1.bf16.msra.mxu0 %v516
        %893 = vmatprep.subr.bf16.mxu0 0
        %894 = vmatpush1.bf16.msra.mxu0 %v515
        %895 = vmatprep.subr.bf16.mxu0 0
        %896 = vmatpush2.bf16.msra.mxu0 0
        %897 = vmatprep.subr.bf16.mxu0 0
        %898 = vmatpush2.bf16.msra.mxu0 0
        %899 = vmatprep.subr.bf16.mxu0 0
        %900 = vmatpush2.bf16.msra.mxu0 0
        %901 = vmatprep.subr.bf16.mxu0 0
        %902 = vmatpush2.bf16.msra.mxu0 0
        %903 = vmatprep.subr.bf16.mxu0 0
        %904 = vmatpush2.bf16.msra.mxu0 0
        %905 = vmatprep.subr.bf16.mxu0 0
        %906 = vmatpush2.bf16.msra.mxu0 0
        %907 = vmatprep.subr.bf16.mxu0 0
        %908 = vmatpush2.bf16.msra.mxu0 0
        %909 = vmatprep.subr.bf16.mxu0 0
        %910 = vmatpush2.bf16.msra.mxu0 0
        %911 = vmatprep.mubr.bf16.mxu0 0
        %912 = vmatmul.mubr.bf16.gmra.mxu0 %v541
        %v913 = vpop.f32.mrf.mxu0
        %v914 = vadd.f32 0.0, %v913
        %v915 = vpop.f32.mrf.mxu0
        %v916 = vpop.f32.mrf.mxu0
        %v917 = vadd.f32 0.0, %v916
        %v918 = vpop.f32.mrf.mxu0
        %919 = vmatprep.mubr.bf16.mxu0 0
        %920 = vmatmul.mubr.bf16.gmra.mxu0 %v544
        %v921 = vpop.f32.mrf.mxu0
        %v922 = vadd.f32 0.0, %v921
        %v923 = vpop.f32.mrf.mxu0
        %v924 = vpop.f32.mrf.mxu0
        %v925 = vadd.f32 0.0, %v924
        %v926 = vpop.f32.mrf.mxu0
        %927 = vmatprep.mubr.bf16.mxu0 0
        %928 = vmatmul.mubr.bf16.gmra.mxu0 %v547
        %v929 = vpop.f32.mrf.mxu0
        %v930 = vadd.f32 0.0, %v929
        %v931 = vpop.f32.mrf.mxu0
        %v932 = vpop.f32.mrf.mxu0
        %v933 = vadd.f32 0.0, %v932
        %v934 = vpop.f32.mrf.mxu0
        %935 = vmatprep.mubr.bf16.mxu0 0
        %936 = vmatmul.mubr.bf16.gmra.mxu0 %v550
        %v937 = vpop.f32.mrf.mxu0
        %v938 = vadd.f32 0.0, %v937
        %v939 = vpop.f32.mrf.mxu0
        %v940 = vpop.f32.mrf.mxu0
        %v941 = vadd.f32 0.0, %v940
        %v942 = vpop.f32.mrf.mxu0
        %943 = vdwg.mxu0
        %v944 = vsub.f32 %v246, %v914
        %v945 = vsub.f32 %v247, %v917
        %v946 = vsub.f32 %v248, %v922
        %v947 = vsub.f32 %v249, %v925
        %v948 = vsub.f32 %v250, %v930
        %v949 = vsub.f32 %v251, %v933
        %v950 = vsub.f32 %v252, %v938
        %v951 = vsub.f32 %v253, %v941
        %v952 = vand.u32 2147483647, %v944
        %v953 = vand.u32 2147483647, %v945
        %v954 = vand.u32 2147483647, %v946
        %v955 = vand.u32 2147483647, %v947
        %v956 = vand.u32 2147483647, %v948
        %v957 = vand.u32 2147483647, %v949
        %v958 = vand.u32 2147483647, %v950
        %v959 = vand.u32 2147483647, %v951
        %vm960 = vcmp.gt.f32.partialorder %v952, 0.039215688
        %vm961 = vcmp.gt.f32.partialorder %v953, 0.039215688
        %vm962 = vcmp.gt.f32.partialorder %v954, 0.039215688
        %vm963 = vcmp.gt.f32.partialorder %v955, 0.039215688
        %vm964 = vcmp.gt.f32.partialorder %v956, 0.039215688
        %vm965 = vcmp.gt.f32.partialorder %v957, 0.039215688
        %vm966 = vcmp.gt.f32.partialorder %v958, 0.039215688
        %vm967 = vcmp.gt.f32.partialorder %v959, 0.039215688
        %v968 = vsel %vm960, 1, 0
        %v969 = vsel %vm961, 1, 0
        %v970 = vsel %vm962, 1, 0
        %v971 = vsel %vm963, 1, 0
        %v972 = vsel %vm964, 1, 0
        %v973 = vsel %vm965, 1, 0
        %v974 = vsel %vm966, 1, 0
        %v975 = vsel %vm967, 1, 0
        %v976 = vcvt.s32.f32 %v968
        %v977 = vcvt.s32.f32 %v969
        %v978 = vcvt.s32.f32 %v970
        %v979 = vcvt.s32.f32 %v971
        %v980 = vcvt.s32.f32 %v972
        %v981 = vcvt.s32.f32 %v973
        %v982 = vcvt.s32.f32 %v974
        %v983 = vcvt.s32.f32 %v975
        %v984 = vpack.c.bf16 %v977, %v976
        %v985 = vpack.c.bf16 %v979, %v978
        %v986 = vpack.c.bf16 %v981, %v980
        %v987 = vpack.c.bf16 %v983, %v982
        %988 = vmatprep.subr.bf16.mxu0 0
        %989 = vmatpush1.bf16.msra.mxu0 %v333
        %990 = vmatprep.subr.bf16.mxu0 0
        %991 = vmatpush1.bf16.msra.mxu0 %v332
        %992 = vmatprep.subr.bf16.mxu0 0
        %993 = vmatpush1.bf16.msra.mxu0 %v331
        %994 = vmatprep.subr.bf16.mxu0 0
        %995 = vmatpush1.bf16.msra.mxu0 %v330
        %996 = vmatprep.subr.bf16.mxu0 0
        %997 = vmatpush1.bf16.msra.mxu0 %v329
        %998 = vmatprep.subr.bf16.mxu0 0
        %999 = vmatpush1.bf16.msra.mxu0 %v328
        %1000 = vmatprep.subr.bf16.mxu0 0
        %1001 = vmatpush1.bf16.msra.mxu0 %v327
        %1002 = vmatprep.subr.bf16.mxu0 0
        %1003 = vmatpush1.bf16.msra.mxu0 %v326
        %1004 = vmatprep.subr.bf16.mxu0 0
        %1005 = vmatpush2.bf16.msra.mxu0 0
        %1006 = vmatprep.subr.bf16.mxu0 0
        %1007 = vmatpush2.bf16.msra.mxu0 0
        %1008 = vmatprep.subr.bf16.mxu0 0
        %1009 = vmatpush2.bf16.msra.mxu0 0
        %1010 = vmatprep.subr.bf16.mxu0 0
        %1011 = vmatpush2.bf16.msra.mxu0 0
        %1012 = vmatprep.subr.bf16.mxu0 0
        %1013 = vmatpush2.bf16.msra.mxu0 0
        %1014 = vmatprep.subr.bf16.mxu0 0
        %1015 = vmatpush2.bf16.msra.mxu0 0
        %1016 = vmatprep.subr.bf16.mxu0 0
        %1017 = vmatpush2.bf16.msra.mxu0 0
        %1018 = vmatprep.subr.bf16.mxu0 0
        %1019 = vmatpush2.bf16.msra.mxu0 0
        %1020 = vmatprep.mubr.bf16.mxu0 0
        %1021 = vmatmul.mubr.bf16.gmra.mxu0 %v657
        %v1022 = vpop.f32.mrf.mxu0
        %v1023 = vadd.f32 0.0, %v1022
        %v1024 = vpop.f32.mrf.mxu0
        %v1025 = vpop.f32.mrf.mxu0
        %v1026 = vadd.f32 0.0, %v1025
        %v1027 = vpop.f32.mrf.mxu0
        %1028 = vmatprep.mubr.bf16.mxu0 0
        %1029 = vmatmul.mubr.bf16.gmra.mxu0 %v658
        %v1030 = vpop.f32.mrf.mxu0
        %v1031 = vadd.f32 0.0, %v1030
        %v1032 = vpop.f32.mrf.mxu0
        %v1033 = vpop.f32.mrf.mxu0
        %v1034 = vadd.f32 0.0, %v1033
        %v1035 = vpop.f32.mrf.mxu0
        %1036 = vmatprep.mubr.bf16.mxu0 0
        %1037 = vmatmul.mubr.bf16.gmra.mxu0 %v659
        %v1038 = vpop.f32.mrf.mxu0
        %v1039 = vadd.f32 0.0, %v1038
        %v1040 = vpop.f32.mrf.mxu0
        %v1041 = vpop.f32.mrf.mxu0
        %v1042 = vadd.f32 0.0, %v1041
        %v1043 = vpop.f32.mrf.mxu0
        %1044 = vmatprep.mubr.bf16.mxu0 0
        %1045 = vmatmul.mubr.bf16.gmra.mxu0 %v660
        %v1046 = vpop.f32.mrf.mxu0
        %v1047 = vadd.f32 0.0, %v1046
        %v1048 = vpop.f32.mrf.mxu0
        %v1049 = vpop.f32.mrf.mxu0
        %v1050 = vadd.f32 0.0, %v1049
        %v1051 = vpop.f32.mrf.mxu0
        %1052 = vmatprep.mubr.bf16.mxu0 0
        %1053 = vmatmul.mubr.bf16.gmra.mxu0 %v766
        %v1054 = vpop.f32.mrf.mxu0
        %v1055 = vadd.f32 0.0, %v1054
        %v1056 = vpop.f32.mrf.mxu0
        %v1057 = vpop.f32.mrf.mxu0
        %v1058 = vadd.f32 0.0, %v1057
        %v1059 = vpop.f32.mrf.mxu0
        %1060 = vmatprep.mubr.bf16.mxu0 0
        %1061 = vmatmul.mubr.bf16.gmra.mxu0 %v767
        %v1062 = vpop.f32.mrf.mxu0
        %v1063 = vadd.f32 0.0, %v1062
        %v1064 = vpop.f32.mrf.mxu0
        %v1065 = vpop.f32.mrf.mxu0
        %v1066 = vadd.f32 0.0, %v1065
        %v1067 = vpop.f32.mrf.mxu0
        %1068 = vmatprep.mubr.bf16.mxu0 0
        %1069 = vmatmul.mubr.bf16.gmra.mxu0 %v768
        %v1070 = vpop.f32.mrf.mxu0
        %v1071 = vadd.f32 0.0, %v1070
        %v1072 = vpop.f32.mrf.mxu0
        %v1073 = vpop.f32.mrf.mxu0
        %v1074 = vadd.f32 0.0, %v1073
        %v1075 = vpop.f32.mrf.mxu0
        %1076 = vmatprep.mubr.bf16.mxu0 0
        %1077 = vmatmul.mubr.bf16.gmra.mxu0 %v769
        %v1078 = vpop.f32.mrf.mxu0
        %v1079 = vadd.f32 0.0, %v1078
        %v1080 = vpop.f32.mrf.mxu0
        %v1081 = vpop.f32.mrf.mxu0
        %v1082 = vadd.f32 0.0, %v1081
        %v1083 = vpop.f32.mrf.mxu0
        %1084 = vmatprep.mubr.bf16.mxu0 0
        %1085 = vmatmul.mubr.bf16.gmra.mxu0 %v875
        %v1086 = vpop.f32.mrf.mxu0
        %v1087 = vadd.f32 0.0, %v1086
        %v1088 = vpop.f32.mrf.mxu0
        %v1089 = vpop.f32.mrf.mxu0
        %v1090 = vadd.f32 0.0, %v1089
        %v1091 = vpop.f32.mrf.mxu0
        %1092 = vmatprep.mubr.bf16.mxu0 0
        %1093 = vmatmul.mubr.bf16.gmra.mxu0 %v876
        %v1094 = vpop.f32.mrf.mxu0
        %v1095 = vadd.f32 0.0, %v1094
        %v1096 = vpop.f32.mrf.mxu0
        %v1097 = vpop.f32.mrf.mxu0
        %v1098 = vadd.f32 0.0, %v1097
        %v1099 = vpop.f32.mrf.mxu0
        %1100 = vmatprep.mubr.bf16.mxu0 0
        %1101 = vmatmul.mubr.bf16.gmra.mxu0 %v877
        %v1102 = vpop.f32.mrf.mxu0
        %v1103 = vadd.f32 0.0, %v1102
        %v1104 = vpop.f32.mrf.mxu0
        %v1105 = vpop.f32.mrf.mxu0
        %v1106 = vadd.f32 0.0, %v1105
        %v1107 = vpop.f32.mrf.mxu0
        %1108 = vmatprep.mubr.bf16.mxu0 0
        %1109 = vmatmul.mubr.bf16.gmra.mxu0 %v878
        %v1110 = vpop.f32.mrf.mxu0
        %v1111 = vadd.f32 0.0, %v1110
        %v1112 = vpop.f32.mrf.mxu0
        %v1113 = vpop.f32.mrf.mxu0
        %v1114 = vadd.f32 0.0, %v1113
        %v1115 = vpop.f32.mrf.mxu0
        %1116 = vmatprep.mubr.bf16.mxu0 0
        %1117 = vmatmul.mubr.bf16.gmra.mxu0 %v984
        %v1118 = vpop.f32.mrf.mxu0
        %v1119 = vadd.f32 0.0, %v1118
        %v1120 = vpop.f32.mrf.mxu0
        %v1121 = vpop.f32.mrf.mxu0
        %v1122 = vadd.f32 0.0, %v1121
        %v1123 = vpop.f32.mrf.mxu0
        %1124 = vmatprep.mubr.bf16.mxu0 0
        %1125 = vmatmul.mubr.bf16.gmra.mxu0 %v985
        %v1126 = vpop.f32.mrf.mxu0
        %v1127 = vadd.f32 0.0, %v1126
        %v1128 = vpop.f32.mrf.mxu0
        %v1129 = vpop.f32.mrf.mxu0
        %v1130 = vadd.f32 0.0, %v1129
        %v1131 = vpop.f32.mrf.mxu0
        %1132 = vmatprep.mubr.bf16.mxu0 0
        %1133 = vmatmul.mubr.bf16.gmra.mxu0 %v986
        %v1134 = vpop.f32.mrf.mxu0
        %v1135 = vadd.f32 0.0, %v1134
        %v1136 = vpop.f32.mrf.mxu0
        %v1137 = vpop.f32.mrf.mxu0
        %v1138 = vadd.f32 0.0, %v1137
        %v1139 = vpop.f32.mrf.mxu0
        %1140 = vmatprep.mubr.bf16.mxu0 0
        %1141 = vmatmul.mubr.bf16.gmra.mxu0 %v987
        %v1142 = vpop.f32.mrf.mxu0
        %v1143 = vadd.f32 0.0, %v1142
        %v1144 = vpop.f32.mrf.mxu0
        %v1145 = vpop.f32.mrf.mxu0
        %v1146 = vadd.f32 0.0, %v1145
        %v1147 = vpop.f32.mrf.mxu0
        %1148 = vdwg.mxu0
        %v1149 = vpack.c.bf16 %v1026, %v1023
        %v1150 = vpack.c.bf16 %v1034, %v1031
        %v1151 = vpack.c.bf16 %v1042, %v1039
        %v1152 = vpack.c.bf16 %v1050, %v1047
        %v1153 = vpack.c.bf16 %v1058, %v1055
        %v1154 = vpack.c.bf16 %v1066, %v1063
        %v1155 = vpack.c.bf16 %v1074, %v1071
        %v1156 = vpack.c.bf16 %v1082, %v1079
        %v1157 = vpack.c.bf16 %v1090, %v1087
        %v1158 = vpack.c.bf16 %v1098, %v1095
        %v1159 = vpack.c.bf16 %v1106, %v1103
        %v1160 = vpack.c.bf16 %v1114, %v1111
        %v1161 = vpack.c.bf16 %v1122, %v1119
        %v1162 = vpack.c.bf16 %v1130, %v1127
        %v1163 = vpack.c.bf16 %v1138, %v1135
        %v1164 = vpack.c.bf16 %v1146, %v1143
        %1165 = vmatprep.subr.bf16.mxu0 0
        %1166 = vmatpush1.bf16.msra.mxu0 0
        %1167 = vmatprep.subr.bf16.mxu0 0
        %1168 = vmatpush1.bf16.msra.mxu0 0
        %1169 = vmatprep.subr.bf16.mxu0 0
        %1170 = vmatpush1.bf16.msra.mxu0 0
        %1171 = vmatprep.subr.bf16.mxu0 0
        %1172 = vmatpush1.bf16.msra.mxu0 0
        %1173 = vmatprep.subr.bf16.mxu0 0
        %1174 = vmatpush1.bf16.msra.mxu0 %v1152
        %1175 = vmatprep.subr.bf16.mxu0 0
        %1176 = vmatpush1.bf16.msra.mxu0 %v1151
        %1177 = vmatprep.subr.bf16.mxu0 0
        %1178 = vmatpush1.bf16.msra.mxu0 %v1150
        %1179 = vmatprep.subr.bf16.mxu0 0
        %1180 = vmatpush1.bf16.msra.mxu0 %v1149
        %1181 = vmatprep.subr.bf16.mxu0 0
        %1182 = vmatpush2.bf16.msra.mxu0 0
        %1183 = vmatprep.subr.bf16.mxu0 0
        %1184 = vmatpush2.bf16.msra.mxu0 0
        %1185 = vmatprep.subr.bf16.mxu0 0
        %1186 = vmatpush2.bf16.msra.mxu0 0
        %1187 = vmatprep.subr.bf16.mxu0 0
        %1188 = vmatpush2.bf16.msra.mxu0 0
        %1189 = vmatprep.subr.bf16.mxu0 0
        %1190 = vmatpush2.bf16.msra.mxu0 0
        %1191 = vmatprep.subr.bf16.mxu0 0
        %1192 = vmatpush2.bf16.msra.mxu0 0
        %1193 = vmatprep.subr.bf16.mxu0 0
        %1194 = vmatpush2.bf16.msra.mxu0 0
        %1195 = vmatprep.subr.bf16.mxu0 0
        %1196 = vmatpush2.bf16.msra.mxu0 0
        %1197 = vmatprep.mubr.bf16.mxu0 0
        %1198 = vmatmul.mubr.bf16.gmra.mxu0 %v541
        %v1199 = vpop.f32.mrf.mxu0
        %v1200 = vadd.f32 0.0, %v1199
        %v1201 = vpop.f32.mrf.mxu0
        %v1202 = vpop.f32.mrf.mxu0
        %v1203 = vadd.f32 0.0, %v1202
        %v1204 = vpop.f32.mrf.mxu0
        %1205 = vmatprep.mubr.bf16.mxu0 0
        %1206 = vmatmul.mubr.bf16.gmra.mxu0 %v544
        %v1207 = vpop.f32.mrf.mxu0
        %v1208 = vadd.f32 0.0, %v1207
        %v1209 = vpop.f32.mrf.mxu0
        %v1210 = vpop.f32.mrf.mxu0
        %v1211 = vadd.f32 0.0, %v1210
        %v1212 = vpop.f32.mrf.mxu0
        %1213 = vmatprep.mubr.bf16.mxu0 0
        %1214 = vmatmul.mubr.bf16.gmra.mxu0 %v547
        %v1215 = vpop.f32.mrf.mxu0
        %v1216 = vadd.f32 0.0, %v1215
        %v1217 = vpop.f32.mrf.mxu0
        %v1218 = vpop.f32.mrf.mxu0
        %v1219 = vadd.f32 0.0, %v1218
        %v1220 = vpop.f32.mrf.mxu0
        %1221 = vmatprep.mubr.bf16.mxu0 0
        %1222 = vmatmul.mubr.bf16.gmra.mxu0 %v550
        %v1223 = vpop.f32.mrf.mxu0
        %v1224 = vadd.f32 0.0, %v1223
        %v1225 = vpop.f32.mrf.mxu0
        %v1226 = vpop.f32.mrf.mxu0
        %v1227 = vadd.f32 0.0, %v1226
        %v1228 = vpop.f32.mrf.mxu0
        %1229 = vdwg.mxu0
        %v1230 = vmul.f32 %v617, 0.5
        %v1231 = vmul.f32 %v618, 0.5
        %v1232 = vmul.f32 %v619, 0.5
        %v1233 = vmul.f32 %v620, 0.5
        %v1234 = vmul.f32 %v621, 0.5
        %v1235 = vmul.f32 %v622, 0.5
        %v1236 = vmul.f32 %v623, 0.5
        %v1237 = vmul.f32 %v624, 0.5
        %v1238 = vadd.f32 %v222, %v1230
        %v1239 = vadd.f32 %v223, %v1231
        %v1240 = vadd.f32 %v224, %v1232
        %v1241 = vadd.f32 %v225, %v1233
        %v1242 = vadd.f32 %v226, %v1234
        %v1243 = vadd.f32 %v227, %v1235
        %v1244 = vadd.f32 %v228, %v1236
        %v1245 = vadd.f32 %v229, %v1237
        %v1246 = vmax.f32 %v1238, 0.0
        %v1247 = vmax.f32 %v1239, 0.0
        %v1248 = vmax.f32 %v1240, 0.0
        %v1249 = vmax.f32 %v1241, 0.0
        %v1250 = vmax.f32 %v1242, 0.0
        %v1251 = vmax.f32 %v1243, 0.0
        %v1252 = vmax.f32 %v1244, 0.0
        %v1253 = vmax.f32 %v1245, 0.0
        %v1254 = vmin.f32 %v1246, 1.0
        %v1255 = vmin.f32 %v1247, 1.0
        %v1256 = vmin.f32 %v1248, 1.0
        %v1257 = vmin.f32 %v1249, 1.0
        %v1258 = vmin.f32 %v1250, 1.0
        %v1259 = vmin.f32 %v1251, 1.0
        %v1260 = vmin.f32 %v1252, 1.0
        %v1261 = vmin.f32 %v1253, 1.0
        %v1262 = vmul.f32 %v1200, %v1254
        %v1263 = vmul.f32 %v1203, %v1255
        %v1264 = vmul.f32 %v1208, %v1256
        %v1265 = vmul.f32 %v1211, %v1257
        %v1266 = vmul.f32 %v1216, %v1258
        %v1267 = vmul.f32 %v1219, %v1259
        %v1268 = vmul.f32 %v1224, %v1260
        %v1269 = vmul.f32 %v1227, %v1261
        %v1270 = vsub.f32 1.0, %v1200
        %v1271 = vsub.f32 1.0, %v1203
        %v1272 = vsub.f32 1.0, %v1208
        %v1273 = vsub.f32 1.0, %v1211
        %v1274 = vsub.f32 1.0, %v1216
        %v1275 = vsub.f32 1.0, %v1219
        %v1276 = vsub.f32 1.0, %v1224
        %v1277 = vsub.f32 1.0, %v1227
        %v1278 = vmul.f32 %v1270, %v222
        %v1279 = vmul.f32 %v1271, %v223
        %v1280 = vmul.f32 %v1272, %v224
        %v1281 = vmul.f32 %v1273, %v225
        %v1282 = vmul.f32 %v1274, %v226
        %v1283 = vmul.f32 %v1275, %v227
        %v1284 = vmul.f32 %v1276, %v228
        %v1285 = vmul.f32 %v1277, %v229
        %v1286 = vadd.f32 %v1262, %v1278
        %v1287 = vadd.f32 %v1263, %v1279
        %v1288 = vadd.f32 %v1264, %v1280
        %v1289 = vadd.f32 %v1265, %v1281
        %v1290 = vadd.f32 %v1266, %v1282
        %v1291 = vadd.f32 %v1267, %v1283
        %v1292 = vadd.f32 %v1268, %v1284
        %v1293 = vadd.f32 %v1269, %v1285
        %1294 = vst [vmem:[%s218] sm:$0xff] %v1286
        %1295 = vst [vmem:[%s218 + $0x8] sm:$0xff] %v1287
        %1296 = vst [vmem:[%s218 + $0x10] sm:$0xff] %v1288
        %1297 = vst [vmem:[%s218 + $0x18] sm:$0xff] %v1289
        %1298 = vst [vmem:[%s218 + $0x20] sm:$0xff] %v1290
        %1299 = vst [vmem:[%s218 + $0x28] sm:$0xff] %v1291
        %1300 = vst [vmem:[%s218 + $0x30] sm:$0xff] %v1292
        %1301 = vst [vmem:[%s218 + $0x38] sm:$0xff] %v1293
        %1302 = vmatprep.subr.bf16.mxu0 0
        %1303 = vmatpush1.bf16.msra.mxu0 0
        %1304 = vmatprep.subr.bf16.mxu0 0
        %1305 = vmatpush1.bf16.msra.mxu0 0
        %1306 = vmatprep.subr.bf16.mxu0 0
        %1307 = vmatpush1.bf16.msra.mxu0 0
        %1308 = vmatprep.subr.bf16.mxu0 0
        %1309 = vmatpush1.bf16.msra.mxu0 0
        %1310 = vmatprep.subr.bf16.mxu0 0
        %1311 = vmatpush1.bf16.msra.mxu0 %v1156
        %1312 = vmatprep.subr.bf16.mxu0 0
        %1313 = vmatpush1.bf16.msra.mxu0 %v1155
        %1314 = vmatprep.subr.bf16.mxu0 0
        %1315 = vmatpush1.bf16.msra.mxu0 %v1154
        %1316 = vmatprep.subr.bf16.mxu0 0
        %1317 = vmatpush1.bf16.msra.mxu0 %v1153
        %1318 = vmatprep.subr.bf16.mxu0 0
        %1319 = vmatpush2.bf16.msra.mxu0 0
        %1320 = vmatprep.subr.bf16.mxu0 0
        %1321 = vmatpush2.bf16.msra.mxu0 0
        %1322 = vmatprep.subr.bf16.mxu0 0
        %1323 = vmatpush2.bf16.msra.mxu0 0
        %1324 = vmatprep.subr.bf16.mxu0 0
        %1325 = vmatpush2.bf16.msra.mxu0 0
        %1326 = vmatprep.subr.bf16.mxu0 0
        %1327 = vmatpush2.bf16.msra.mxu0 0
        %1328 = vmatprep.subr.bf16.mxu0 0
        %1329 = vmatpush2.bf16.msra.mxu0 0
        %1330 = vmatprep.subr.bf16.mxu0 0
        %1331 = vmatpush2.bf16.msra.mxu0 0
        %1332 = vmatprep.subr.bf16.mxu0 0
        %1333 = vmatpush2.bf16.msra.mxu0 0
        %1334 = vmatprep.mubr.bf16.mxu0 0
        %1335 = vmatmul.mubr.bf16.gmra.mxu0 %v541
        %v1336 = vpop.f32.mrf.mxu0
        %v1337 = vadd.f32 0.0, %v1336
        %v1338 = vpop.f32.mrf.mxu0
        %v1339 = vpop.f32.mrf.mxu0
        %v1340 = vadd.f32 0.0, %v1339
        %v1341 = vpop.f32.mrf.mxu0
        %1342 = vmatprep.mubr.bf16.mxu0 0
        %1343 = vmatmul.mubr.bf16.gmra.mxu0 %v544
        %v1344 = vpop.f32.mrf.mxu0
        %v1345 = vadd.f32 0.0, %v1344
        %v1346 = vpop.f32.mrf.mxu0
        %v1347 = vpop.f32.mrf.mxu0
        %v1348 = vadd.f32 0.0, %v1347
        %v1349 = vpop.f32.mrf.mxu0
        %1350 = vmatprep.mubr.bf16.mxu0 0
        %1351 = vmatmul.mubr.bf16.gmra.mxu0 %v547
        %v1352 = vpop.f32.mrf.mxu0
        %v1353 = vadd.f32 0.0, %v1352
        %v1354 = vpop.f32.mrf.mxu0
        %v1355 = vpop.f32.mrf.mxu0
        %v1356 = vadd.f32 0.0, %v1355
        %v1357 = vpop.f32.mrf.mxu0
        %1358 = vmatprep.mubr.bf16.mxu0 0
        %1359 = vmatmul.mubr.bf16.gmra.mxu0 %v550
        %v1360 = vpop.f32.mrf.mxu0
        %v1361 = vadd.f32 0.0, %v1360
        %v1362 = vpop.f32.mrf.mxu0
        %v1363 = vpop.f32.mrf.mxu0
        %v1364 = vadd.f32 0.0, %v1363
        %v1365 = vpop.f32.mrf.mxu0
        %1366 = vdwg.mxu0
        %v1367 = vmul.f32 %v726, 0.5
        %v1368 = vmul.f32 %v727, 0.5
        %v1369 = vmul.f32 %v728, 0.5
        %v1370 = vmul.f32 %v729, 0.5
        %v1371 = vmul.f32 %v730, 0.5
        %v1372 = vmul.f32 %v731, 0.5
        %v1373 = vmul.f32 %v732, 0.5
        %v1374 = vmul.f32 %v733, 0.5
        %v1375 = vadd.f32 %v230, %v1367
        %v1376 = vadd.f32 %v231, %v1368
        %v1377 = vadd.f32 %v232, %v1369
        %v1378 = vadd.f32 %v233, %v1370
        %v1379 = vadd.f32 %v234, %v1371
        %v1380 = vadd.f32 %v235, %v1372
        %v1381 = vadd.f32 %v236, %v1373
        %v1382 = vadd.f32 %v237, %v1374
        %v1383 = vmax.f32 %v1375, 0.0
        %v1384 = vmax.f32 %v1376, 0.0
        %v1385 = vmax.f32 %v1377, 0.0
        %v1386 = vmax.f32 %v1378, 0.0
        %v1387 = vmax.f32 %v1379, 0.0
        %v1388 = vmax.f32 %v1380, 0.0
        %v1389 = vmax.f32 %v1381, 0.0
        %v1390 = vmax.f32 %v1382, 0.0
        %v1391 = vmin.f32 %v1383, 1.0
        %v1392 = vmin.f32 %v1384, 1.0
        %v1393 = vmin.f32 %v1385, 1.0
        %v1394 = vmin.f32 %v1386, 1.0
        %v1395 = vmin.f32 %v1387, 1.0
        %v1396 = vmin.f32 %v1388, 1.0
        %v1397 = vmin.f32 %v1389, 1.0
        %v1398 = vmin.f32 %v1390, 1.0
        %v1399 = vmul.f32 %v1337, %v1391
        %v1400 = vmul.f32 %v1340, %v1392
        %v1401 = vmul.f32 %v1345, %v1393
        %v1402 = vmul.f32 %v1348, %v1394
        %v1403 = vmul.f32 %v1353, %v1395
        %v1404 = vmul.f32 %v1356, %v1396
        %v1405 = vmul.f32 %v1361, %v1397
        %v1406 = vmul.f32 %v1364, %v1398
        %v1407 = vsub.f32 1.0, %v1337
        %v1408 = vsub.f32 1.0, %v1340
        %v1409 = vsub.f32 1.0, %v1345
        %v1410 = vsub.f32 1.0, %v1348
        %v1411 = vsub.f32 1.0, %v1353
        %v1412 = vsub.f32 1.0, %v1356
        %v1413 = vsub.f32 1.0, %v1361
        %v1414 = vsub.f32 1.0, %v1364
        %v1415 = vmul.f32 %v1407, %v230
        %v1416 = vmul.f32 %v1408, %v231
        %v1417 = vmul.f32 %v1409, %v232
        %v1418 = vmul.f32 %v1410, %v233
        %v1419 = vmul.f32 %v1411, %v234
        %v1420 = vmul.f32 %v1412, %v235
        %v1421 = vmul.f32 %v1413, %v236
        %v1422 = vmul.f32 %v1414, %v237
        %v1423 = vadd.f32 %v1399, %v1415
        %v1424 = vadd.f32 %v1400, %v1416
        %v1425 = vadd.f32 %v1401, %v1417
        %v1426 = vadd.f32 %v1402, %v1418
        %v1427 = vadd.f32 %v1403, %v1419
        %v1428 = vadd.f32 %v1404, %v1420
        %v1429 = vadd.f32 %v1405, %v1421
        %v1430 = vadd.f32 %v1406, %v1422
        %s1431 = scalar_lea.vmem %s218, 64 [#allocation8]
        %1432 = vst [vmem:[%s1431] sm:$0xff] %v1423
        %1433 = vst [vmem:[%s1431 + $0x8] sm:$0xff] %v1424
        %1434 = vst [vmem:[%s1431 + $0x10] sm:$0xff] %v1425
        %1435 = vst [vmem:[%s1431 + $0x18] sm:$0xff] %v1426
        %1436 = vst [vmem:[%s1431 + $0x20] sm:$0xff] %v1427
        %1437 = vst [vmem:[%s1431 + $0x28] sm:$0xff] %v1428
        %1438 = vst [vmem:[%s1431 + $0x30] sm:$0xff] %v1429
        %1439 = vst [vmem:[%s1431 + $0x38] sm:$0xff] %v1430
        %1440 = vmatprep.subr.bf16.mxu0 0
        %1441 = vmatpush1.bf16.msra.mxu0 0
        %1442 = vmatprep.subr.bf16.mxu0 0
        %1443 = vmatpush1.bf16.msra.mxu0 0
        %1444 = vmatprep.subr.bf16.mxu0 0
        %1445 = vmatpush1.bf16.msra.mxu0 0
        %1446 = vmatprep.subr.bf16.mxu0 0
        %1447 = vmatpush1.bf16.msra.mxu0 0
        %1448 = vmatprep.subr.bf16.mxu0 0
        %1449 = vmatpush1.bf16.msra.mxu0 %v1160
        %1450 = vmatprep.subr.bf16.mxu0 0
        %1451 = vmatpush1.bf16.msra.mxu0 %v1159
        %1452 = vmatprep.subr.bf16.mxu0 0
        %1453 = vmatpush1.bf16.msra.mxu0 %v1158
        %1454 = vmatprep.subr.bf16.mxu0 0
        %1455 = vmatpush1.bf16.msra.mxu0 %v1157
        %1456 = vmatprep.subr.bf16.mxu0 0
        %1457 = vmatpush2.bf16.msra.mxu0 0
        %1458 = vmatprep.subr.bf16.mxu0 0
        %1459 = vmatpush2.bf16.msra.mxu0 0
        %1460 = vmatprep.subr.bf16.mxu0 0
        %1461 = vmatpush2.bf16.msra.mxu0 0
        %1462 = vmatprep.subr.bf16.mxu0 0
        %1463 = vmatpush2.bf16.msra.mxu0 0
        %1464 = vmatprep.subr.bf16.mxu0 0
        %1465 = vmatpush2.bf16.msra.mxu0 0
        %1466 = vmatprep.subr.bf16.mxu0 0
        %1467 = vmatpush2.bf16.msra.mxu0 0
        %1468 = vmatprep.subr.bf16.mxu0 0
        %1469 = vmatpush2.bf16.msra.mxu0 0
        %1470 = vmatprep.subr.bf16.mxu0 0
        %1471 = vmatpush2.bf16.msra.mxu0 0
        %1472 = vmatprep.mubr.bf16.mxu0 0
        %1473 = vmatmul.mubr.bf16.gmra.mxu0 %v541
        %v1474 = vpop.f32.mrf.mxu0
        %v1475 = vadd.f32 0.0, %v1474
        %v1476 = vpop.f32.mrf.mxu0
        %v1477 = vpop.f32.mrf.mxu0
        %v1478 = vadd.f32 0.0, %v1477
        %v1479 = vpop.f32.mrf.mxu0
        %1480 = vmatprep.mubr.bf16.mxu0 0
        %1481 = vmatmul.mubr.bf16.gmra.mxu0 %v544
        %v1482 = vpop.f32.mrf.mxu0
        %v1483 = vadd.f32 0.0, %v1482
        %v1484 = vpop.f32.mrf.mxu0
        %v1485 = vpop.f32.mrf.mxu0
        %v1486 = vadd.f32 0.0, %v1485
        %v1487 = vpop.f32.mrf.mxu0
        %1488 = vmatprep.mubr.bf16.mxu0 0
        %1489 = vmatmul.mubr.bf16.gmra.mxu0 %v547
        %v1490 = vpop.f32.mrf.mxu0
        %v1491 = vadd.f32 0.0, %v1490
        %v1492 = vpop.f32.mrf.mxu0
        %v1493 = vpop.f32.mrf.mxu0
        %v1494 = vadd.f32 0.0, %v1493
        %v1495 = vpop.f32.mrf.mxu0
        %1496 = vmatprep.mubr.bf16.mxu0 0
        %1497 = vmatmul.mubr.bf16.gmra.mxu0 %v550
        %v1498 = vpop.f32.mrf.mxu0
        %v1499 = vadd.f32 0.0, %v1498
        %v1500 = vpop.f32.mrf.mxu0
        %v1501 = vpop.f32.mrf.mxu0
        %v1502 = vadd.f32 0.0, %v1501
        %v1503 = vpop.f32.mrf.mxu0
        %1504 = vdwg.mxu0
        %v1505 = vmul.f32 %v835, 0.5
        %v1506 = vmul.f32 %v836, 0.5
        %v1507 = vmul.f32 %v837, 0.5
        %v1508 = vmul.f32 %v838, 0.5
        %v1509 = vmul.f32 %v839, 0.5
        %v1510 = vmul.f32 %v840, 0.5
        %v1511 = vmul.f32 %v841, 0.5
        %v1512 = vmul.f32 %v842, 0.5
        %v1513 = vadd.f32 %v238, %v1505
        %v1514 = vadd.f32 %v239, %v1506
        %v1515 = vadd.f32 %v240, %v1507
        %v1516 = vadd.f32 %v241, %v1508
        %v1517 = vadd.f32 %v242, %v1509
        %v1518 = vadd.f32 %v243, %v1510
        %v1519 = vadd.f32 %v244, %v1511
        %v1520 = vadd.f32 %v245, %v1512
        %v1521 = vmax.f32 %v1513, 0.0
        %v1522 = vmax.f32 %v1514, 0.0
        %v1523 = vmax.f32 %v1515, 0.0
        %v1524 = vmax.f32 %v1516, 0.0
        %v1525 = vmax.f32 %v1517, 0.0
        %v1526 = vmax.f32 %v1518, 0.0
        %v1527 = vmax.f32 %v1519, 0.0
        %v1528 = vmax.f32 %v1520, 0.0
        %v1529 = vmin.f32 %v1521, 1.0
        %v1530 = vmin.f32 %v1522, 1.0
        %v1531 = vmin.f32 %v1523, 1.0
        %v1532 = vmin.f32 %v1524, 1.0
        %v1533 = vmin.f32 %v1525, 1.0
        %v1534 = vmin.f32 %v1526, 1.0
        %v1535 = vmin.f32 %v1527, 1.0
        %v1536 = vmin.f32 %v1528, 1.0
        %v1537 = vmul.f32 %v1475, %v1529
        %v1538 = vmul.f32 %v1478, %v1530
        %v1539 = vmul.f32 %v1483, %v1531
        %v1540 = vmul.f32 %v1486, %v1532
        %v1541 = vmul.f32 %v1491, %v1533
        %v1542 = vmul.f32 %v1494, %v1534
        %v1543 = vmul.f32 %v1499, %v1535
        %v1544 = vmul.f32 %v1502, %v1536
        %v1545 = vsub.f32 1.0, %v1475
        %v1546 = vsub.f32 1.0, %v1478
        %v1547 = vsub.f32 1.0, %v1483
        %v1548 = vsub.f32 1.0, %v1486
        %v1549 = vsub.f32 1.0, %v1491
        %v1550 = vsub.f32 1.0, %v1494
        %v1551 = vsub.f32 1.0, %v1499
        %v1552 = vsub.f32 1.0, %v1502
        %v1553 = vmul.f32 %v1545, %v238
        %v1554 = vmul.f32 %v1546, %v239
        %v1555 = vmul.f32 %v1547, %v240
        %v1556 = vmul.f32 %v1548, %v241
        %v1557 = vmul.f32 %v1549, %v242
        %v1558 = vmul.f32 %v1550, %v243
        %v1559 = vmul.f32 %v1551, %v244
        %v1560 = vmul.f32 %v1552, %v245
        %v1561 = vadd.f32 %v1537, %v1553
        %v1562 = vadd.f32 %v1538, %v1554
        %v1563 = vadd.f32 %v1539, %v1555
        %v1564 = vadd.f32 %v1540, %v1556
        %v1565 = vadd.f32 %v1541, %v1557
        %v1566 = vadd.f32 %v1542, %v1558
        %v1567 = vadd.f32 %v1543, %v1559
        %v1568 = vadd.f32 %v1544, %v1560
        %s1569 = scalar_lea.vmem %s218, 128 [#allocation8]
        %1570 = vst [vmem:[%s1569] sm:$0xff] %v1561
        %1571 = vst [vmem:[%s1569 + $0x8] sm:$0xff] %v1562
        %1572 = vst [vmem:[%s1569 + $0x10] sm:$0xff] %v1563
        %1573 = vst [vmem:[%s1569 + $0x18] sm:$0xff] %v1564
        %1574 = vst [vmem:[%s1569 + $0x20] sm:$0xff] %v1565
        %1575 = vst [vmem:[%s1569 + $0x28] sm:$0xff] %v1566
        %1576 = vst [vmem:[%s1569 + $0x30] sm:$0xff] %v1567
        %1577 = vst [vmem:[%s1569 + $0x38] sm:$0xff] %v1568
        %1578 = vmatprep.subr.bf16.mxu0 0
        %1579 = vmatpush1.bf16.msra.mxu0 0
        %1580 = vmatprep.subr.bf16.mxu0 0
        %1581 = vmatpush1.bf16.msra.mxu0 0
        %1582 = vmatprep.subr.bf16.mxu0 0
        %1583 = vmatpush1.bf16.msra.mxu0 0
        %1584 = vmatprep.subr.bf16.mxu0 0
        %1585 = vmatpush1.bf16.msra.mxu0 0
        %1586 = vmatprep.subr.bf16.mxu0 0
        %1587 = vmatpush1.bf16.msra.mxu0 %v1164
        %1588 = vmatprep.subr.bf16.mxu0 0
        %1589 = vmatpush1.bf16.msra.mxu0 %v1163
        %1590 = vmatprep.subr.bf16.mxu0 0
        %1591 = vmatpush1.bf16.msra.mxu0 %v1162
        %1592 = vmatprep.subr.bf16.mxu0 0
        %1593 = vmatpush1.bf16.msra.mxu0 %v1161
        %1594 = vmatprep.subr.bf16.mxu0 0
        %1595 = vmatpush2.bf16.msra.mxu0 0
        %1596 = vmatprep.subr.bf16.mxu0 0
        %1597 = vmatpush2.bf16.msra.mxu0 0
        %1598 = vmatprep.subr.bf16.mxu0 0
        %1599 = vmatpush2.bf16.msra.mxu0 0
        %1600 = vmatprep.subr.bf16.mxu0 0
        %1601 = vmatpush2.bf16.msra.mxu0 0
        %1602 = vmatprep.subr.bf16.mxu0 0
        %1603 = vmatpush2.bf16.msra.mxu0 0
        %1604 = vmatprep.subr.bf16.mxu0 0
        %1605 = vmatpush2.bf16.msra.mxu0 0
        %1606 = vmatprep.subr.bf16.mxu0 0
        %1607 = vmatpush2.bf16.msra.mxu0 0
        %1608 = vmatprep.subr.bf16.mxu0 0
        %1609 = vmatpush2.bf16.msra.mxu0 0
        %1610 = vmatprep.mubr.bf16.mxu0 0
        %1611 = vmatmul.mubr.bf16.gmra.mxu0 %v541
        %v1612 = vpop.f32.mrf.mxu0
        %v1613 = vadd.f32 0.0, %v1612
        %v1614 = vpop.f32.mrf.mxu0
        %v1615 = vpop.f32.mrf.mxu0
        %v1616 = vadd.f32 0.0, %v1615
        %v1617 = vpop.f32.mrf.mxu0
        %1618 = vmatprep.mubr.bf16.mxu0 0
        %1619 = vmatmul.mubr.bf16.gmra.mxu0 %v544
        %v1620 = vpop.f32.mrf.mxu0
        %v1621 = vadd.f32 0.0, %v1620
        %v1622 = vpop.f32.mrf.mxu0
        %v1623 = vpop.f32.mrf.mxu0
        %v1624 = vadd.f32 0.0, %v1623
        %v1625 = vpop.f32.mrf.mxu0
        %1626 = vmatprep.mubr.bf16.mxu0 0
        %1627 = vmatmul.mubr.bf16.gmra.mxu0 %v547
        %v1628 = vpop.f32.mrf.mxu0
        %v1629 = vadd.f32 0.0, %v1628
        %v1630 = vpop.f32.mrf.mxu0
        %v1631 = vpop.f32.mrf.mxu0
        %v1632 = vadd.f32 0.0, %v1631
        %v1633 = vpop.f32.mrf.mxu0
        %1634 = vmatprep.mubr.bf16.mxu0 0
        %1635 = vmatmul.mubr.bf16.gmra.mxu0 %v550
        %v1636 = vpop.f32.mrf.mxu0
        %v1637 = vadd.f32 0.0, %v1636
        %v1638 = vpop.f32.mrf.mxu0
        %v1639 = vpop.f32.mrf.mxu0
        %v1640 = vadd.f32 0.0, %v1639
        %v1641 = vpop.f32.mrf.mxu0
        %1642 = vdwg.mxu0
        %v1643 = vmul.f32 %v944, 0.5
        %v1644 = vmul.f32 %v945, 0.5
        %v1645 = vmul.f32 %v946, 0.5
        %v1646 = vmul.f32 %v947, 0.5
        %v1647 = vmul.f32 %v948, 0.5
        %v1648 = vmul.f32 %v949, 0.5
        %v1649 = vmul.f32 %v950, 0.5
        %v1650 = vmul.f32 %v951, 0.5
        %v1651 = vadd.f32 %v246, %v1643
        %v1652 = vadd.f32 %v247, %v1644
        %v1653 = vadd.f32 %v248, %v1645
        %v1654 = vadd.f32 %v249, %v1646
        %v1655 = vadd.f32 %v250, %v1647
        %v1656 = vadd.f32 %v251, %v1648
        %v1657 = vadd.f32 %v252, %v1649
        %v1658 = vadd.f32 %v253, %v1650
        %v1659 = vmax.f32 %v1651, 0.0
        %v1660 = vmax.f32 %v1652, 0.0
        %v1661 = vmax.f32 %v1653, 0.0
        %v1662 = vmax.f32 %v1654, 0.0
        %v1663 = vmax.f32 %v1655, 0.0
        %v1664 = vmax.f32 %v1656, 0.0
        %v1665 = vmax.f32 %v1657, 0.0
        %v1666 = vmax.f32 %v1658, 0.0
        %v1667 = vmin.f32 %v1659, 1.0
        %v1668 = vmin.f32 %v1660, 1.0
        %v1669 = vmin.f32 %v1661, 1.0
        %v1670 = vmin.f32 %v1662, 1.0
        %v1671 = vmin.f32 %v1663, 1.0
        %v1672 = vmin.f32 %v1664, 1.0
        %v1673 = vmin.f32 %v1665, 1.0
        %v1674 = vmin.f32 %v1666, 1.0
        %v1675 = vmul.f32 %v1613, %v1667
        %v1676 = vmul.f32 %v1616, %v1668
        %v1677 = vmul.f32 %v1621, %v1669
        %v1678 = vmul.f32 %v1624, %v1670
        %v1679 = vmul.f32 %v1629, %v1671
        %v1680 = vmul.f32 %v1632, %v1672
        %v1681 = vmul.f32 %v1637, %v1673
        %v1682 = vmul.f32 %v1640, %v1674
        %v1683 = vsub.f32 1.0, %v1613
        %v1684 = vsub.f32 1.0, %v1616
        %v1685 = vsub.f32 1.0, %v1621
        %v1686 = vsub.f32 1.0, %v1624
        %v1687 = vsub.f32 1.0, %v1629
        %v1688 = vsub.f32 1.0, %v1632
        %v1689 = vsub.f32 1.0, %v1637
        %v1690 = vsub.f32 1.0, %v1640
        %v1691 = vmul.f32 %v1683, %v246
        %v1692 = vmul.f32 %v1684, %v247
        %v1693 = vmul.f32 %v1685, %v248
        %v1694 = vmul.f32 %v1686, %v249
        %v1695 = vmul.f32 %v1687, %v250
        %v1696 = vmul.f32 %v1688, %v251
        %v1697 = vmul.f32 %v1689, %v252
        %v1698 = vmul.f32 %v1690, %v253
        %v1699 = vadd.f32 %v1675, %v1691
        %v1700 = vadd.f32 %v1676, %v1692
        %v1701 = vadd.f32 %v1677, %v1693
        %v1702 = vadd.f32 %v1678, %v1694
        %v1703 = vadd.f32 %v1679, %v1695
        %v1704 = vadd.f32 %v1680, %v1696
        %v1705 = vadd.f32 %v1681, %v1697
        %v1706 = vadd.f32 %v1682, %v1698
        %s1707 = scalar_lea.vmem %s218, 192 [#allocation8]
        %1708 = vst [vmem:[%s1707] sm:$0xff] %v1699
        %1709 = vst [vmem:[%s1707 + $0x8] sm:$0xff] %v1700
        %1710 = vst [vmem:[%s1707 + $0x10] sm:$0xff] %v1701
        %1711 = vst [vmem:[%s1707 + $0x18] sm:$0xff] %v1702
        %1712 = vst [vmem:[%s1707 + $0x20] sm:$0xff] %v1703
        %1713 = vst [vmem:[%s1707 + $0x28] sm:$0xff] %v1704
        %1714 = vst [vmem:[%s1707 + $0x30] sm:$0xff] %v1705
        %1715 = vst [vmem:[%s1707 + $0x38] sm:$0xff] %v1706
        %s1716 = sand.u32 %s97, 1
        %s1717 = scalar_lea.sflag [#allocation4], %s1716
        %s1718 = sand.u32 %s97, 1
        %s1719 = smul.addr %s1718, 256
        %s1720 = scalar_lea.vmem [#allocation8], %s1719
        // Predicated region
        $region45: #{tpu_custom_call.1} parent=31 // pred_check
          %p1721 = pneg %p107
        $region46: #{tpu_custom_call.1} parent=31 // pred_check_branch
          %1723 = sbr.rel (%p1721) target = $region48
        $region47: #{tpu_custom_call.1} parent=31 // pred_region
          %s1724 = smul.u32 4, %s21
          %s1726 = ssub.s32 4096, 4096
          %1727 = vsyncadd %s1717, %s1726
          %s1728 = smul.addr %s1724, 8
          %s1729 = smul.addr %s1728, 128
          %s1730 = scalar_lea.hbm %s3, %s1729
          %s1731 = sshll.u32 %s1720, 4
          %s1732 = int_to_ptr.vmem [resolvable:$true] %s1731
          %1737 = dma.vmem_to_hbm [thread:$0]  %s1732, 4096, %s1730, %s1717, 128, 128, 8
        $region48: #{tpu_custom_call.1} parent=31 // pred_fallthru
          _
      $region32: #{tpu_custom_call.1} parent=5 // pred_fallthru
        _
      %p1738 = scmp.le.s32.totalorder 2, %s16
      // Predicated region
      $region49: #{tpu_custom_call.1} parent=5 // pred_check
        %p1739 = pneg %p1738
      $region50: #{tpu_custom_call.1} parent=5 // pred_check_branch
        %1741 = sbr.rel (%p1739) target = $region52
      $region51: #{tpu_custom_call.1} parent=5 // pred_region
        %s1742 = ssub.s32 %s16, 2
        // Predicated region
        $region53: #{tpu_custom_call.1} parent=51 // pred_check
          %p1743 = pneg %p113
        $region54: #{tpu_custom_call.1} parent=51 // pred_check_branch
          %1745 = sbr.rel (%p1743) target = $region56
        $region55: #{tpu_custom_call.1} parent=51 // pred_region
          %s1746 = sand.u32 %s98, 1
          %s1747 = scalar_lea.sflag [#allocation4], %s1746
          %s1748 = sand.u32 %s98, 1
          %s1749 = smul.addr %s1748, 256
          %s1750 = scalar_lea.vmem [#allocation8], %s1749
          %1751 = dma.done %s1747, 4096
        $region56: #{tpu_custom_call.1} parent=51 // pred_fallthru
          _
      $region52: #{tpu_custom_call.1} parent=5 // pred_fallthru
        _
    $region6: #{tpu_custom_call.1} parent=1 // loop_footer
      %s20 = sadd.s32 1, %s16
    $region7: #{tpu_custom_call.1} parent=1 // loop_footer_branch
      %15 = sbr.rel target = $region3
    $region8: #{tpu_custom_call.1} parent=1 // loop_exit
      _
    %1752 = vsyncpa [#allocation3], 1
    %s1753 = scalar_lea.sflag [#allocation3], 1
    %1754 = vsyncpa %s1753, 1
    %1755 = vsyncpa [#allocation6], 1
    %1756 = vsyncpa [#allocation4], 1
    %s1757 = scalar_lea.sflag [#allocation4], 1
    %1758 = vsyncpa %s1757, 1

</llo_original>
